<compile_context>
chip_gen: v5e
topology: v5e:2x2
jax: 0.10.0
libtpu: 0.0.40
codegen_flags: <defaults>
</compile_context>

<pallas_src>
import functools
import typing

import jax
import jax.numpy as jnp
from jax.experimental import pallas as pl
from jax.experimental.pallas import tpu as pltpu


def _round_up(x: int, m: int) -> int:
    return (x + m - 1) // m * m


class Selection(typing.NamedTuple):
    value: jax.Array
    index: jax.Array
    n: int
    k: int


def _parent_select_kernel(assess_ref, u_ref, sel_ref, *, p_actual, sign):
    """One (TN, P_pad) tile of pairs: softmax probs (per-row, cheap) + 2 weighted draws without
    replacement per pair via Efraimidis-Spirakis keys; writes (TN, 2) parent indices."""
    a = assess_ref[...]                                    # (1, P_pad) raw (padded) assessment
    _, p_pad = a.shape

    col = jax.lax.broadcasted_iota(jnp.int32, (1, p_pad), 1)
    valid = col < p_actual

    # ---- to_prob: softmax(sign * assessment) over the population (lane) axis ----
    # Computed once on a single (1, P_pad) row per tile -> negligible next to per-pair work.
    logits = jnp.where(valid, sign * a, -1e30)
    mx = jnp.max(logits, axis=-1, keepdims=True)
    e = jnp.where(valid, jnp.exp(logits - mx), 0.0)
    prob = e * (1.0 / jnp.sum(e, axis=-1, keepdims=True))
    inv_prob = 1.0 / jnp.maximum(prob, 1e-30)              # (1, P_pad), broadcast below

    # ---- Efraimidis-Spirakis keys: top-2 of log(u)/prob == 2 draws without replacement ----
    keys = jnp.log(u_ref[...]) * inv_prob                  # (TN, P_pad): 1 log + 1 mul / elem
    keys = jnp.where(valid, keys, -1e30)

    # ---- parent 1: argmax of keys ----
    k1 = jnp.max(keys, axis=-1, keepdims=True)
    sel0 = jnp.min(jnp.where(keys == k1, col, p_pad), axis=-1, keepdims=True)   # (TN, 1)

    # ---- parent 2: mask parent 1's column, argmax again (without replacement) ----
    keys2 = jnp.where(col == sel0, -1e30, keys)
    k2 = jnp.max(keys2, axis=-1, keepdims=True)
    sel1 = jnp.min(jnp.where(keys2 == k2, col, p_pad), axis=-1, keepdims=True)  # (TN, 1)

    # single coalesced store of both parents per pair row
    sel_ref[...] = jnp.concatenate([sel0, sel1], axis=1)


class ParentSelector:
    """Chooses 2 * n_pairs parents from a 1-D assessment (fitness) vector."""

    def __init__(self, n_pairs: int, pop_dim: int = 0):
        self._n_pairs = n_pairs
        self._pop_dim = pop_dim

    def forward(self, assessment: jax.Array, seed: int = 0, maximize: bool = False):
        if assessment.ndim != 1:
            # TODO(synk): multi-dim assessment path (align + gather along pop_dim) not implemented.
            raise NotImplementedError("Only 1-D assessment is supported in this kernel.")

        p = assessment.shape[0]
        p_pad = max(128, _round_up(p, 128))

        # Pair-axis tile: keep each (TN, P_pad) f32 temporary ~1 MiB so ~6 live temps plus the
        # double-buffered noise input fit the scoped-VMEM defaults on v5e/v6e/v7x.
        tn = max(8, min(512, ((1 << 20) // (4 * p_pad)) // 8 * 8))
        n_pad = _round_up(max(self._n_pairs, 8), tn)
        num_tiles = n_pad // tn

        a_pad = jnp.pad(assessment.astype(jnp.float32).reshape(1, p),
                        ((0, 0), (0, p_pad - p)))
        # Uniform noise per (pair, candidate): generated host-side (interpret-safe, no per-tile
        # reseeding concerns) and streamed through the grid as a pipelined input.
        u = jax.random.uniform(jax.random.PRNGKey(seed), (n_pad, p_pad),
                               dtype=jnp.float32, minval=2.0 ** -24, maxval=1.0)

        kernel = functools.partial(_parent_select_kernel, p_actual=p,
                                   sign=1.0 if maximize else -1.0)
        sel = pl.pallas_call(
            kernel,
            grid=(num_tiles,),
            in_specs=[
                pl.BlockSpec((1, p_pad), lambda i: (0, 0)),    # assessment row (revisited)
                pl.BlockSpec((tn, p_pad), lambda i: (i, 0)),   # noise tile
            ],
            out_specs=pl.BlockSpec((tn, 2), lambda i: (i, 0)),
            out_shape=jax.ShapeDtypeStruct((n_pad, 2), jnp.int32),
            compiler_params=pltpu.CompilerParams(
                dimension_semantics=("parallel",),
                vmem_limit_bytes=32 * 1024 * 1024),
        )(a_pad, u)

        sel = sel[: self._n_pairs]                         # (n_pairs, 2) = [parent1, parent2]
        # == selection.permute(1, 0).flatten(); value = assessment[selection]; reshape(2, -1)
        selection = sel.T.reshape(2, -1)
        value = assessment[selection.reshape(-1)].reshape(2, -1)

        s1 = Selection(value[0], selection[0], self._n_pairs, 2)
        s2 = Selection(value[1], selection[1], self._n_pairs, 2)
        return s1, s2


if __name__ == "__main__":
    key = jax.random.PRNGKey(0)
    P, N_PAIRS = 16, 8
    assessment = jax.random.normal(key, (P,), dtype=jnp.float32)

    selector = ParentSelector(n_pairs=N_PAIRS)
    s1, s2 = selector.forward(assessment, seed=0, maximize=False)
    jax.block_until_ready((s1.value, s1.index, s2.value, s2.index))

    # sanity checks: indices in range, values are the gathered assessment entries,
    # and the two parents of each pair are distinct (sampling without replacement).
    assert s1.index.shape == (N_PAIRS,) and s2.index.shape == (N_PAIRS,)
    assert bool(jnp.all((s1.index >= 0) & (s1.index < P)))
    assert bool(jnp.all((s2.index >= 0) & (s2.index < P)))
    assert bool(jnp.allclose(s1.value, assessment[s1.index]))
    assert bool(jnp.allclose(s2.value, assessment[s2.index]))
    assert bool(jnp.all(s1.index != s2.index))

    print("KERNEL_OK")
</pallas_src>

<mosaic_0001>
module attributes {stable_mosaic.version = 11 : i64} {
  func.func @_parent_select_kernel(%arg0: i32, %arg1: memref<1x128xf32, #tpu.memory_space<vmem>>, %arg2: memref<512x128xf32, #tpu.memory_space<vmem>>, %arg3: memref<512x2xi32, #tpu.memory_space<vmem>>) attributes {dimension_semantics = [#tpu.dimension_semantics<parallel>], iteration_bounds = array<i64: 1>, scalar_prefetch = 0 : i64, scratch_operands = 0 : i64, tpu.core_type = #tpu.core_type<tc>, window_params = [{pipeline_mode = #tpu.pipeline_mode<synchronous>, transform_indices = @transform_0, window_bounds = array<i64: 1, 128>}, {transform_indices = @transform_1, window_bounds = array<i64: 512, 128>}, {transform_indices = @transform_2, window_bounds = array<i64: 512, 2>}]} {
    %c0 = arith.constant 0 : index
    %c0_0 = arith.constant 0 : index
    %0 = vector.load %arg1[%c0, %c0_0] : memref<1x128xf32, #tpu.memory_space<vmem>>, vector<1x128xf32>
    %1 = tpu.iota {dimensions = array<i32: 1>} : vector<1x128xi32>
    %c16_i32 = arith.constant 16 : i32
    %2 = vector.broadcast %c16_i32 : i32 to vector<1x128xi32>
    %3 = arith.cmpi slt, %1, %2 : vector<1x128xi32>
    %cst = arith.constant -1.000000e+00 : f32
    %4 = vector.broadcast %cst : f32 to vector<1x128xf32>
    %5 = arith.mulf %4, %0 : vector<1x128xf32>
    %cst_1 = arith.constant -1.000000e+30 : f32
    %6 = vector.broadcast %cst_1 : f32 to vector<1x128xf32>
    %7 = arith.select %3, %5, %6 : vector<1x128xi1>, vector<1x128xf32>
    %cst_2 = arith.constant dense<0xFF800000> : vector<1xf32>
    %8 = vector.multi_reduction <maximumf>, %7, %cst_2 [1] : vector<1x128xf32> to vector<1xf32>
    %9 = vector.shape_cast %8 : vector<1xf32> to vector<1x1xf32>
    %10 = vector.broadcast %9 : vector<1x1xf32> to vector<1x128xf32>
    %11 = arith.subf %7, %10 : vector<1x128xf32>
    %12 = math.exp %11 : vector<1x128xf32>
    %cst_3 = arith.constant 0.000000e+00 : f32
    %13 = vector.broadcast %cst_3 : f32 to vector<1x128xf32>
    %14 = arith.select %3, %12, %13 : vector<1x128xi1>, vector<1x128xf32>
    %cst_4 = arith.constant dense<0.000000e+00> : vector<1xf32>
    %15 = vector.multi_reduction <add>, %14, %cst_4 [1] : vector<1x128xf32> to vector<1xf32>
    %16 = vector.shape_cast %15 : vector<1xf32> to vector<1x1xf32>
    %cst_5 = arith.constant 1.000000e+00 : f32
    %17 = vector.broadcast %cst_5 : f32 to vector<1x1xf32>
    %18 = arith.divf %17, %16 : vector<1x1xf32>
    %19 = vector.broadcast %18 : vector<1x1xf32> to vector<1x128xf32>
    %20 = arith.mulf %14, %19 : vector<1x128xf32>
    %cst_6 = arith.constant 1.000000e-30 : f32
    %21 = vector.broadcast %cst_6 : f32 to vector<1x128xf32>
    %22 = arith.maximumf %20, %21 : vector<1x128xf32>
    %cst_7 = arith.constant 1.000000e+00 : f32
    %23 = vector.broadcast %cst_7 : f32 to vector<1x128xf32>
    %24 = arith.divf %23, %22 : vector<1x128xf32>
    %c0_8 = arith.constant 0 : index
    %c0_9 = arith.constant 0 : index
    %25 = vector.load %arg2[%c0_8, %c0_9] : memref<512x128xf32, #tpu.memory_space<vmem>>, vector<512x128xf32>
    %26 = math.log %25 : vector<512x128xf32>
    %27 = vector.broadcast %24 : vector<1x128xf32> to vector<512x128xf32>
    %28 = arith.mulf %26, %27 : vector<512x128xf32>
    %cst_10 = arith.constant -1.000000e+30 : f32
    %29 = vector.shape_cast %3 : vector<1x128xi1> to vector<1x128xi1>
    %30 = vector.broadcast %29 : vector<1x128xi1> to vector<512x128xi1>
    %31 = vector.broadcast %cst_10 : f32 to vector<512x128xf32>
    %32 = arith.select %30, %28, %31 : vector<512x128xi1>, vector<512x128xf32>
    %cst_11 = arith.constant dense<0xFF800000> : vector<512xf32>
    %33 = vector.multi_reduction <maximumf>, %32, %cst_11 [1] : vector<512x128xf32> to vector<512xf32>
    %34 = vector.shape_cast %33 : vector<512xf32> to vector<512x1xf32>
    %35 = vector.broadcast %34 : vector<512x1xf32> to vector<512x128xf32>
    %36 = arith.cmpf oeq, %32, %35 : vector<512x128xf32>
    %c128_i32 = arith.constant 128 : i32
    %37 = vector.shape_cast %1 : vector<1x128xi32> to vector<1x128xi32>
    %38 = vector.broadcast %37 : vector<1x128xi32> to vector<512x128xi32>
    %39 = vector.broadcast %c128_i32 : i32 to vector<512x128xi32>
    %40 = arith.select %36, %38, %39 : vector<512x128xi1>, vector<512x128xi32>
    %cst_12 = arith.constant dense<2147483647> : vector<512xi32>
    %41 = vector.multi_reduction <minsi>, %40, %cst_12 [1] : vector<512x128xi32> to vector<512xi32>
    %42 = vector.shape_cast %41 : vector<512xi32> to vector<512x1xi32>
    %43 = vector.broadcast %1 : vector<1x128xi32> to vector<512x128xi32>
    %44 = vector.broadcast %42 : vector<512x1xi32> to vector<512x128xi32>
    %45 = arith.cmpi eq, %43, %44 : vector<512x128xi32>
    %cst_13 = arith.constant -1.000000e+30 : f32
    %46 = vector.broadcast %cst_13 : f32 to vector<512x128xf32>
    %47 = arith.select %45, %46, %32 : vector<512x128xi1>, vector<512x128xf32>
    %cst_14 = arith.constant dense<0xFF800000> : vector<512xf32>
    %48 = vector.multi_reduction <maximumf>, %47, %cst_14 [1] : vector<512x128xf32> to vector<512xf32>
    %49 = vector.shape_cast %48 : vector<512xf32> to vector<512x1xf32>
    %50 = vector.broadcast %49 : vector<512x1xf32> to vector<512x128xf32>
    %51 = arith.cmpf oeq, %47, %50 : vector<512x128xf32>
    %c128_i32_15 = arith.constant 128 : i32
    %52 = vector.shape_cast %1 : vector<1x128xi32> to vector<1x128xi32>
    %53 = vector.broadcast %52 : vector<1x128xi32> to vector<512x128xi32>
    %54 = vector.broadcast %c128_i32_15 : i32 to vector<512x128xi32>
    %55 = arith.select %51, %53, %54 : vector<512x128xi1>, vector<512x128xi32>
    %cst_16 = arith.constant dense<2147483647> : vector<512xi32>
    %56 = vector.multi_reduction <minsi>, %55, %cst_16 [1] : vector<512x128xi32> to vector<512xi32>
    %57 = vector.shape_cast %56 : vector<512xi32> to vector<512x1xi32>
    %58 = tpu.concatenate %42, %57 in 1 : vector<512x1xi32>, vector<512x1xi32> -> vector<512x2xi32>
    %c0_17 = arith.constant 0 : index
    %c0_18 = arith.constant 0 : index
    %59 = vector.load %arg3[%c0_17, %c0_18] : memref<512x2xi32, #tpu.memory_space<vmem>>, vector<512x2xi32>
    tpu.vector_store %arg3[%c0_17, %c0_18], %58 {strides = array<i32>} : memref<512x2xi32, #tpu.memory_space<vmem>>, vector<512x2xi32>,
    return
  }
  func.func @transform_0(%arg0: i32) -> (i32, i32) {
    %c0_i32 = arith.constant 0 : i32
    %c0_i32_0 = arith.constant 0 : i32
    %c0_i32_1 = arith.constant 0 : i32
    return %c0_i32, %c0_i32_0 : i32, i32
  }
  func.func @transform_1(%arg0: i32) -> (i32, i32) {
    %c0_i32 = arith.constant 0 : i32
    %c0_i32_0 = arith.constant 0 : i32
    return %arg0, %c0_i32 : i32, i32
  }
  func.func @transform_2(%arg0: i32) -> (i32, i32) {
    %c0_i32 = arith.constant 0 : i32
    %c0_i32_0 = arith.constant 0 : i32
    return %arg0, %c0_i32 : i32, i32
  }
}

</mosaic_0001>

<llo_original>
// kernel: tpu_custom_call.1
$region0: #{tpu_custom_call.1}
  #allocation0 [shape = 'u32[]', space=smem, size = 0x4, offset = 0x4, fixed_abs, tag = 'smem constant byte address 0x4 - core index']
  #allocation1 [shape = 'u32[72,128]{1,0:T(1,128)}', space=vmem, size = 0x9000, scoped, tag = 'internal scratch']
  %s0 = inlined_call_operand.hbm [shape: f32[1,128], index: 0, kind: input, shape index: {}]
  %s1 = inlined_call_operand.hbm [shape: f32[512,128], index: 1, kind: input, shape index: {}]
  %s2 = inlined_call_operand.vmem [shape: s32[512,2], index: 2, kind: output, shape index: {}]
  %s3 = sld [smem:[#allocation0]]
  $region26: #{tpu_custom_call.1} parent=0
    _
  %s5 = ssub.s32 1, %s3
  %s6 = scalar_select 0, %s5, %s3
  $region1: #{tpu_custom_call.1} parent=0
    #allocation2 [shape = 'u8[512]{0}', space=vmem, size = 0x400, scoped, tag = 'input window, operand 0, single buffered']
    #allocation3 [shape = 's32[1]{0}', space=sflag, size = 0x4, scoped, tag = 'scoped memory for tpu_custom_call.1']
    #allocation4 [shape = 'u8[262144]{0}', space=vmem, size = 0x40000, scoped, tag = 'input window, operand 1, single buffered']
    #allocation5 [shape = 's32[1]{0}', space=sflag, size = 0x4, scoped, tag = 'scoped memory for tpu_custom_call.1']
    %7 = vsyncpa [#allocation3], 0
    %8 = vsyncpa [#allocation5], 0
    // Predicated region
    $region2: #{tpu_custom_call.1} parent=1 // pred_check
      _
    $region3: #{tpu_custom_call.1} parent=1 // pred_check_branch
      %10 = sbr.rel (0) target = $region5
    $region4: #{tpu_custom_call.1} parent=1 // pred_region
      %12 = vsyncadd [#allocation3], 0
      %s14 = sshll.u32 %s0, 4
      %s15 = int_to_ptr.hbm [resolvable:$true] %s14
      %s16 = sshll.u32 [#allocation2], 4
      %s17 = int_to_ptr.vmem [resolvable:$true] %s16
      %19 = dma.hbm_to_vmem [thread:$0]  %s15, 16, %s17, [#allocation3]
    $region5: #{tpu_custom_call.1} parent=1 // pred_fallthru
      _
    // Predicated region
    $region6: #{tpu_custom_call.1} parent=1 // pred_check
      _
    $region7: #{tpu_custom_call.1} parent=1 // pred_check_branch
      %21 = sbr.rel (0) target = $region9
    $region8: #{tpu_custom_call.1} parent=1 // pred_region
      %23 = vsyncadd [#allocation5], 0
      %s24 = sshll.u32 %s1, 4
      %s25 = int_to_ptr.hbm [resolvable:$true] %s24
      %s26 = sshll.u32 [#allocation4], 4
      %s27 = int_to_ptr.vmem [resolvable:$true] %s26
      %32 = dma.hbm_to_vmem [thread:$0]  %s25, 8192, %s27, [#allocation5], 128, 128, 8
    $region9: #{tpu_custom_call.1} parent=1 // pred_fallthru
      _
    // Predicated region
    $region10: #{tpu_custom_call.1} parent=1 // pred_check
      _
    $region11: #{tpu_custom_call.1} parent=1 // pred_check_branch
      %34 = sbr.rel (0) target = $region13
    $region12: #{tpu_custom_call.1} parent=1 // pred_region
      %36 = dma.done [#allocation3], 16
    $region13: #{tpu_custom_call.1} parent=1 // pred_fallthru
      _
    // Predicated region
    $region14: #{tpu_custom_call.1} parent=1 // pred_check
      _
    $region15: #{tpu_custom_call.1} parent=1 // pred_check_branch
      %38 = sbr.rel (0) target = $region17
    $region16: #{tpu_custom_call.1} parent=1 // pred_region
      %40 = dma.done [#allocation5], 8192
    $region17: #{tpu_custom_call.1} parent=1 // pred_fallthru
      _
    %v41 = vld [vmem:[#allocation2] sm:$0x1]
    %v42 = vlaneseq
    %v43 = vand.u32 %v42, 127
    %vm44 = vcmp.lt.s32.totalorder %v43, 16
    %v45 = vmul.f32 %v41, -1.0
    %v46 = vsel %vm44, %v45, -1e+30
    %vm47 = vcmask 1040384
    %v48 = vsel %vm47, %v46, -inf
    %49 = vmax.xlane.f32.xlu0 %v48
    %v50 = vpop.xlane.xlu0 %49
    %v51 = vsub.f32 %v46, %v50
    %v52 = vmul.f32 %v51, 1.442695
    %v53 = vpow.pop %v52
    %v54 = vsel %vm44, %v53, 0.0
    %v55 = vsel %vm47, %v54, 0.0
    %56 = vadd.xlane.f32.xlu0 %v55
    %v57 = vpop.xlane.xlu0 %56
    %v58 = vrcp.pop %v57
    %v59 = vmul.f32 %v57, %v58
    %v60 = vsub.f32 1.0, %v59
    %v61 = vmul.f32 %v58, %v60
    %v62 = vadd.f32 %v58, %v61
    %vm63 = vweird.f32 %v57
    %vm64 = vweird.f32 %v58
    %vm65 = vmor %vm63, %vm64
    %v66 = vsel %vm65, %v58, %v62
    %v67 = vand.u32 2147483647, %v57
    %vm68 = vcmp.eq.f32.partialorder %v67, 8.507059e+37
    %v69 = vand.u32 %v57, 2147483648
    %v70 = vor.u32 1.1754944e-38, %v69
    %v71 = vsel %vm68, %v70, %v66
    %v72 = vmul.f32 1.0, %v71
    %v73 = vmul.f32 %v54, %v72
    %v74 = vmax.f32 %v73, 1e-30
    %v75 = vrcp.pop %v74
    %v76 = vmul.f32 %v74, %v75
    %v77 = vsub.f32 1.0, %v76
    %v78 = vmul.f32 %v75, %v77
    %v79 = vadd.f32 %v75, %v78
    %vm80 = vweird.f32 %v74
    %vm81 = vweird.f32 %v75
    %vm82 = vmor %vm80, %vm81
    %v83 = vsel %vm82, %v75, %v79
    %v84 = vand.u32 2147483647, %v74
    %vm85 = vcmp.eq.f32.partialorder %v84, 8.507059e+37
    %v86 = vand.u32 %v74, 2147483648
    %v87 = vor.u32 1.1754944e-38, %v86
    %v88 = vsel %vm85, %v87, %v83
    %v89 = vmul.f32 1.0, %v88
    %v90 = vld [vmem:[#allocation4] sm:$0xff]
    %v91 = vld [vmem:[#allocation4 + $0x8] sm:$0xff]
    %v92 = vld [vmem:[#allocation4 + $0x10] sm:$0xff]
    %v93 = vld [vmem:[#allocation4 + $0x18] sm:$0xff]
    %v94 = vld [vmem:[#allocation4 + $0x20] sm:$0xff]
    %v95 = vld [vmem:[#allocation4 + $0x28] sm:$0xff]
    %v96 = vld [vmem:[#allocation4 + $0x30] sm:$0xff]
    %v97 = vld [vmem:[#allocation4 + $0x38] sm:$0xff]
    %v98 = vld [vmem:[#allocation4 + $0x40] sm:$0xff]
    %v99 = vld [vmem:[#allocation4 + $0x48] sm:$0xff]
    %v100 = vld [vmem:[#allocation4 + $0x50] sm:$0xff]
    %v101 = vld [vmem:[#allocation4 + $0x58] sm:$0xff]
    %v102 = vld [vmem:[#allocation4 + $0x60] sm:$0xff]
    %v103 = vld [vmem:[#allocation4 + $0x68] sm:$0xff]
    %v104 = vld [vmem:[#allocation4 + $0x70] sm:$0xff]
    %v105 = vld [vmem:[#allocation4 + $0x78] sm:$0xff]
    %v106 = vld [vmem:[#allocation4 + $0x80] sm:$0xff]
    %v107 = vld [vmem:[#allocation4 + $0x88] sm:$0xff]
    %v108 = vld [vmem:[#allocation4 + $0x90] sm:$0xff]
    %v109 = vld [vmem:[#allocation4 + $0x98] sm:$0xff]
    %v110 = vld [vmem:[#allocation4 + $0xa0] sm:$0xff]
    %v111 = vld [vmem:[#allocation4 + $0xa8] sm:$0xff]
    %v112 = vld [vmem:[#allocation4 + $0xb0] sm:$0xff]
    %v113 = vld [vmem:[#allocation4 + $0xb8] sm:$0xff]
    %v114 = vld [vmem:[#allocation4 + $0xc0] sm:$0xff]
    %v115 = vld [vmem:[#allocation4 + $0xc8] sm:$0xff]
    %v116 = vld [vmem:[#allocation4 + $0xd0] sm:$0xff]
    %v117 = vld [vmem:[#allocation4 + $0xd8] sm:$0xff]
    %v118 = vld [vmem:[#allocation4 + $0xe0] sm:$0xff]
    %v119 = vld [vmem:[#allocation4 + $0xe8] sm:$0xff]
    %v120 = vld [vmem:[#allocation4 + $0xf0] sm:$0xff]
    %v121 = vld [vmem:[#allocation4 + $0xf8] sm:$0xff]
    %v122 = vld [vmem:[#allocation4 + $0x100] sm:$0xff]
    %v123 = vld [vmem:[#allocation4 + $0x108] sm:$0xff]
    %v124 = vld [vmem:[#allocation4 + $0x110] sm:$0xff]
    %v125 = vld [vmem:[#allocation4 + $0x118] sm:$0xff]
    %v126 = vld [vmem:[#allocation4 + $0x120] sm:$0xff]
    %v127 = vld [vmem:[#allocation4 + $0x128] sm:$0xff]
    %v128 = vld [vmem:[#allocation4 + $0x130] sm:$0xff]
    %v129 = vld [vmem:[#allocation4 + $0x138] sm:$0xff]
    %v130 = vld [vmem:[#allocation4 + $0x140] sm:$0xff]
    %v131 = vld [vmem:[#allocation4 + $0x148] sm:$0xff]
    %v132 = vld [vmem:[#allocation4 + $0x150] sm:$0xff]
    %v133 = vld [vmem:[#allocation4 + $0x158] sm:$0xff]
    %v134 = vld [vmem:[#allocation4 + $0x160] sm:$0xff]
    %v135 = vld [vmem:[#allocation4 + $0x168] sm:$0xff]
    %v136 = vld [vmem:[#allocation4 + $0x170] sm:$0xff]
    %v137 = vld [vmem:[#allocation4 + $0x178] sm:$0xff]
    %v138 = vld [vmem:[#allocation4 + $0x180] sm:$0xff]
    %v139 = vld [vmem:[#allocation4 + $0x188] sm:$0xff]
    %v140 = vld [vmem:[#allocation4 + $0x190] sm:$0xff]
    %v141 = vld [vmem:[#allocation4 + $0x198] sm:$0xff]
    %v142 = vld [vmem:[#allocation4 + $0x1a0] sm:$0xff]
    %v143 = vld [vmem:[#allocation4 + $0x1a8] sm:$0xff]
    %v144 = vld [vmem:[#allocation4 + $0x1b0] sm:$0xff]
    %v145 = vld [vmem:[#allocation4 + $0x1b8] sm:$0xff]
    %v146 = vld [vmem:[#allocation4 + $0x1c0] sm:$0xff]
    %v147 = vld [vmem:[#allocation4 + $0x1c8] sm:$0xff]
    %v148 = vld [vmem:[#allocation4 + $0x1d0] sm:$0xff]
    %v149 = vld [vmem:[#allocation4 + $0x1d8] sm:$0xff]
    %v150 = vld [vmem:[#allocation4 + $0x1e0] sm:$0xff]
    %v151 = vld [vmem:[#allocation4 + $0x1e8] sm:$0xff]
    %v152 = vld [vmem:[#allocation4 + $0x1f0] sm:$0xff]
    %v153 = vld [vmem:[#allocation4 + $0x1f8] sm:$0xff]
    %v154 = vlog2.pop %v90
    %v155 = vmul.f32 %v154, 0.6931472
    %v156 = vlog2.pop %v91
    %v157 = vmul.f32 %v156, 0.6931472
    %v158 = vlog2.pop %v92
    %v159 = vmul.f32 %v158, 0.6931472
    %v160 = vlog2.pop %v93
    %v161 = vmul.f32 %v160, 0.6931472
    %v162 = vlog2.pop %v94
    %v163 = vmul.f32 %v162, 0.6931472
    %v164 = vlog2.pop %v95
    %v165 = vmul.f32 %v164, 0.6931472
    %v166 = vlog2.pop %v96
    %v167 = vmul.f32 %v166, 0.6931472
    %v168 = vlog2.pop %v97
    %v169 = vmul.f32 %v168, 0.6931472
    %v170 = vlog2.pop %v98
    %v171 = vmul.f32 %v170, 0.6931472
    %v172 = vlog2.pop %v99
    %v173 = vmul.f32 %v172, 0.6931472
    %v174 = vlog2.pop %v100
    %v175 = vmul.f32 %v174, 0.6931472
    %v176 = vlog2.pop %v101
    %v177 = vmul.f32 %v176, 0.6931472
    %v178 = vlog2.pop %v102
    %v179 = vmul.f32 %v178, 0.6931472
    %v180 = vlog2.pop %v103
    %v181 = vmul.f32 %v180, 0.6931472
    %v182 = vlog2.pop %v104
    %v183 = vmul.f32 %v182, 0.6931472
    %v184 = vlog2.pop %v105
    %v185 = vmul.f32 %v184, 0.6931472
    %v186 = vlog2.pop %v106
    %v187 = vmul.f32 %v186, 0.6931472
    %v188 = vlog2.pop %v107
    %v189 = vmul.f32 %v188, 0.6931472
    %v190 = vlog2.pop %v108
    %v191 = vmul.f32 %v190, 0.6931472
    %v192 = vlog2.pop %v109
    %v193 = vmul.f32 %v192, 0.6931472
    %v194 = vlog2.pop %v110
    %v195 = vmul.f32 %v194, 0.6931472
    %v196 = vlog2.pop %v111
    %v197 = vmul.f32 %v196, 0.6931472
    %v198 = vlog2.pop %v112
    %v199 = vmul.f32 %v198, 0.6931472
    %v200 = vlog2.pop %v113
    %v201 = vmul.f32 %v200, 0.6931472
    %v202 = vlog2.pop %v114
    %v203 = vmul.f32 %v202, 0.6931472
    %v204 = vlog2.pop %v115
    %v205 = vmul.f32 %v204, 0.6931472
    %v206 = vlog2.pop %v116
    %v207 = vmul.f32 %v206, 0.6931472
    %v208 = vlog2.pop %v117
    %v209 = vmul.f32 %v208, 0.6931472
    %v210 = vlog2.pop %v118
    %v211 = vmul.f32 %v210, 0.6931472
    %v212 = vlog2.pop %v119
    %v213 = vmul.f32 %v212, 0.6931472
    %v214 = vlog2.pop %v120
    %v215 = vmul.f32 %v214, 0.6931472
    %v216 = vlog2.pop %v121
    %v217 = vmul.f32 %v216, 0.6931472
    %v218 = vlog2.pop %v122
    %v219 = vmul.f32 %v218, 0.6931472
    %v220 = vlog2.pop %v123
    %v221 = vmul.f32 %v220, 0.6931472
    %v222 = vlog2.pop %v124
    %v223 = vmul.f32 %v222, 0.6931472
    %v224 = vlog2.pop %v125
    %v225 = vmul.f32 %v224, 0.6931472
    %v226 = vlog2.pop %v126
    %v227 = vmul.f32 %v226, 0.6931472
    %v228 = vlog2.pop %v127
    %v229 = vmul.f32 %v228, 0.6931472
    %v230 = vlog2.pop %v128
    %v231 = vmul.f32 %v230, 0.6931472
    %v232 = vlog2.pop %v129
    %v233 = vmul.f32 %v232, 0.6931472
    %v234 = vlog2.pop %v130
    %v235 = vmul.f32 %v234, 0.6931472
    %v236 = vlog2.pop %v131
    %v237 = vmul.f32 %v236, 0.6931472
    %v238 = vlog2.pop %v132
    %v239 = vmul.f32 %v238, 0.6931472
    %v240 = vlog2.pop %v133
    %v241 = vmul.f32 %v240, 0.6931472
    %v242 = vlog2.pop %v134
    %v243 = vmul.f32 %v242, 0.6931472
    %v244 = vlog2.pop %v135
    %v245 = vmul.f32 %v244, 0.6931472
    %v246 = vlog2.pop %v136
    %v247 = vmul.f32 %v246, 0.6931472
    %v248 = vlog2.pop %v137
    %v249 = vmul.f32 %v248, 0.6931472
    %v250 = vlog2.pop %v138
    %v251 = vmul.f32 %v250, 0.6931472
    %v252 = vlog2.pop %v139
    %v253 = vmul.f32 %v252, 0.6931472
    %v254 = vlog2.pop %v140
    %v255 = vmul.f32 %v254, 0.6931472
    %v256 = vlog2.pop %v141
    %v257 = vmul.f32 %v256, 0.6931472
    %v258 = vlog2.pop %v142
    %v259 = vmul.f32 %v258, 0.6931472
    %v260 = vlog2.pop %v143
    %v261 = vmul.f32 %v260, 0.6931472
    %v262 = vlog2.pop %v144
    %v263 = vmul.f32 %v262, 0.6931472
    %v264 = vlog2.pop %v145
    %v265 = vmul.f32 %v264, 0.6931472
    %v266 = vlog2.pop %v146
    %v267 = vmul.f32 %v266, 0.6931472
    %v268 = vlog2.pop %v147
    %v269 = vmul.f32 %v268, 0.6931472
    %v270 = vlog2.pop %v148
    %v271 = vmul.f32 %v270, 0.6931472
    %v272 = vlog2.pop %v149
    %v273 = vmul.f32 %v272, 0.6931472
    %v274 = vlog2.pop %v150
    %v275 = vmul.f32 %v274, 0.6931472
    %v276 = vlog2.pop %v151
    %v277 = vmul.f32 %v276, 0.6931472
    %v278 = vlog2.pop %v152
    %v279 = vmul.f32 %v278, 0.6931472
    %v280 = vlog2.pop %v153
    %v281 = vmul.f32 %v280, 0.6931472
    %v282 = vperm.slane %v89, 0
    %v283 = vmul.f32 %v155, %v282
    %v284 = vmul.f32 %v157, %v282
    %v285 = vmul.f32 %v159, %v282
    %v286 = vmul.f32 %v161, %v282
    %v287 = vmul.f32 %v163, %v282
    %v288 = vmul.f32 %v165, %v282
    %v289 = vmul.f32 %v167, %v282
    %v290 = vmul.f32 %v169, %v282
    %v291 = vmul.f32 %v171, %v282
    %v292 = vmul.f32 %v173, %v282
    %v293 = vmul.f32 %v175, %v282
    %v294 = vmul.f32 %v177, %v282
    %v295 = vmul.f32 %v179, %v282
    %v296 = vmul.f32 %v181, %v282
    %v297 = vmul.f32 %v183, %v282
    %v298 = vmul.f32 %v185, %v282
    %v299 = vmul.f32 %v187, %v282
    %v300 = vmul.f32 %v189, %v282
    %v301 = vmul.f32 %v191, %v282
    %v302 = vmul.f32 %v193, %v282
    %v303 = vmul.f32 %v195, %v282
    %v304 = vmul.f32 %v197, %v282
    %v305 = vmul.f32 %v199, %v282
    %v306 = vmul.f32 %v201, %v282
    %v307 = vmul.f32 %v203, %v282
    %v308 = vmul.f32 %v205, %v282
    %v309 = vmul.f32 %v207, %v282
    %v310 = vmul.f32 %v209, %v282
    %v311 = vmul.f32 %v211, %v282
    %v312 = vmul.f32 %v213, %v282
    %v313 = vmul.f32 %v215, %v282
    %v314 = vmul.f32 %v217, %v282
    %v315 = vmul.f32 %v219, %v282
    %v316 = vmul.f32 %v221, %v282
    %v317 = vmul.f32 %v223, %v282
    %v318 = vmul.f32 %v225, %v282
    %v319 = vmul.f32 %v227, %v282
    %v320 = vmul.f32 %v229, %v282
    %v321 = vmul.f32 %v231, %v282
    %v322 = vmul.f32 %v233, %v282
    %v323 = vmul.f32 %v235, %v282
    %v324 = vmul.f32 %v237, %v282
    %v325 = vmul.f32 %v239, %v282
    %v326 = vmul.f32 %v241, %v282
    %v327 = vmul.f32 %v243, %v282
    %v328 = vmul.f32 %v245, %v282
    %v329 = vmul.f32 %v247, %v282
    %v330 = vmul.f32 %v249, %v282
    %v331 = vmul.f32 %v251, %v282
    %v332 = vmul.f32 %v253, %v282
    %v333 = vmul.f32 %v255, %v282
    %v334 = vmul.f32 %v257, %v282
    %v335 = vmul.f32 %v259, %v282
    %v336 = vmul.f32 %v261, %v282
    %v337 = vmul.f32 %v263, %v282
    %v338 = vmul.f32 %v265, %v282
    %v339 = vmul.f32 %v267, %v282
    %v340 = vmul.f32 %v269, %v282
    %v341 = vmul.f32 %v271, %v282
    %v342 = vmul.f32 %v273, %v282
    %v343 = vmul.f32 %v275, %v282
    %v344 = vmul.f32 %v277, %v282
    %v345 = vmul.f32 %v279, %v282
    %v346 = vmul.f32 %v281, %v282
    %v347 = vsel %vm44, 1, 0
    %vm348 = vcmp.eq.s32.totalorder %v347, 1
    %v349 = vsel %vm348, %v283, -1e+30
    %v350 = vsel %vm348, %v284, -1e+30
    %v351 = vsel %vm348, %v285, -1e+30
    %v352 = vsel %vm348, %v286, -1e+30
    %v353 = vsel %vm348, %v287, -1e+30
    %v354 = vsel %vm348, %v288, -1e+30
    %v355 = vsel %vm348, %v289, -1e+30
    %v356 = vsel %vm348, %v290, -1e+30
    %v357 = vsel %vm348, %v291, -1e+30
    %v358 = vsel %vm348, %v292, -1e+30
    %v359 = vsel %vm348, %v293, -1e+30
    %v360 = vsel %vm348, %v294, -1e+30
    %v361 = vsel %vm348, %v295, -1e+30
    %v362 = vsel %vm348, %v296, -1e+30
    %v363 = vsel %vm348, %v297, -1e+30
    %v364 = vsel %vm348, %v298, -1e+30
    %v365 = vsel %vm348, %v299, -1e+30
    %v366 = vsel %vm348, %v300, -1e+30
    %v367 = vsel %vm348, %v301, -1e+30
    %v368 = vsel %vm348, %v302, -1e+30
    %v369 = vsel %vm348, %v303, -1e+30
    %v370 = vsel %vm348, %v304, -1e+30
    %v371 = vsel %vm348, %v305, -1e+30
    %v372 = vsel %vm348, %v306, -1e+30
    %v373 = vsel %vm348, %v307, -1e+30
    %v374 = vsel %vm348, %v308, -1e+30
    %v375 = vsel %vm348, %v309, -1e+30
    %v376 = vsel %vm348, %v310, -1e+30
    %v377 = vsel %vm348, %v311, -1e+30
    %v378 = vsel %vm348, %v312, -1e+30
    %v379 = vsel %vm348, %v313, -1e+30
    %v380 = vsel %vm348, %v314, -1e+30
    %v381 = vsel %vm348, %v315, -1e+30
    %v382 = vsel %vm348, %v316, -1e+30
    %v383 = vsel %vm348, %v317, -1e+30
    %v384 = vsel %vm348, %v318, -1e+30
    %v385 = vsel %vm348, %v319, -1e+30
    %v386 = vsel %vm348, %v320, -1e+30
    %v387 = vsel %vm348, %v321, -1e+30
    %v388 = vsel %vm348, %v322, -1e+30
    %v389 = vsel %vm348, %v323, -1e+30
    %v390 = vsel %vm348, %v324, -1e+30
    %v391 = vsel %vm348, %v325, -1e+30
    %v392 = vsel %vm348, %v326, -1e+30
    %v393 = vsel %vm348, %v327, -1e+30
    %v394 = vsel %vm348, %v328, -1e+30
    %v395 = vsel %vm348, %v329, -1e+30
    %v396 = vsel %vm348, %v330, -1e+30
    %v397 = vsel %vm348, %v331, -1e+30
    %v398 = vsel %vm348, %v332, -1e+30
    %v399 = vsel %vm348, %v333, -1e+30
    %v400 = vsel %vm348, %v334, -1e+30
    %v401 = vsel %vm348, %v335, -1e+30
    %v402 = vsel %vm348, %v336, -1e+30
    %v403 = vsel %vm348, %v337, -1e+30
    %v404 = vsel %vm348, %v338, -1e+30
    %v405 = vsel %vm348, %v339, -1e+30
    %v406 = vsel %vm348, %v340, -1e+30
    %v407 = vsel %vm348, %v341, -1e+30
    %v408 = vsel %vm348, %v342, -1e+30
    %v409 = vsel %vm348, %v343, -1e+30
    %v410 = vsel %vm348, %v344, -1e+30
    %v411 = vsel %vm348, %v345, -1e+30
    %v412 = vsel %vm348, %v346, -1e+30
    %413 = vmax.xlane.f32.xlu0 %v349
    %v414 = vpop.xlane.xlu0 %413
    %415 = vmax.xlane.f32.xlu0 %v350
    %v416 = vpop.xlane.xlu0 %415
    %417 = vmax.xlane.f32.xlu0 %v351
    %v418 = vpop.xlane.xlu0 %417
    %419 = vmax.xlane.f32.xlu0 %v352
    %v420 = vpop.xlane.xlu0 %419
    %421 = vmax.xlane.f32.xlu0 %v353
    %v422 = vpop.xlane.xlu0 %421
    %423 = vmax.xlane.f32.xlu0 %v354
    %v424 = vpop.xlane.xlu0 %423
    %425 = vmax.xlane.f32.xlu0 %v355
    %v426 = vpop.xlane.xlu0 %425
    %427 = vmax.xlane.f32.xlu0 %v356
    %v428 = vpop.xlane.xlu0 %427
    %429 = vmax.xlane.f32.xlu0 %v357
    %v430 = vpop.xlane.xlu0 %429
    %431 = vmax.xlane.f32.xlu0 %v358
    %v432 = vpop.xlane.xlu0 %431
    %433 = vmax.xlane.f32.xlu0 %v359
    %v434 = vpop.xlane.xlu0 %433
    %435 = vmax.xlane.f32.xlu0 %v360
    %v436 = vpop.xlane.xlu0 %435
    %437 = vmax.xlane.f32.xlu0 %v361
    %v438 = vpop.xlane.xlu0 %437
    %439 = vmax.xlane.f32.xlu0 %v362
    %v440 = vpop.xlane.xlu0 %439
    %441 = vmax.xlane.f32.xlu0 %v363
    %v442 = vpop.xlane.xlu0 %441
    %443 = vmax.xlane.f32.xlu0 %v364
    %v444 = vpop.xlane.xlu0 %443
    %445 = vmax.xlane.f32.xlu0 %v365
    %v446 = vpop.xlane.xlu0 %445
    %447 = vmax.xlane.f32.xlu0 %v366
    %v448 = vpop.xlane.xlu0 %447
    %449 = vmax.xlane.f32.xlu0 %v367
    %v450 = vpop.xlane.xlu0 %449
    %451 = vmax.xlane.f32.xlu0 %v368
    %v452 = vpop.xlane.xlu0 %451
    %453 = vmax.xlane.f32.xlu0 %v369
    %v454 = vpop.xlane.xlu0 %453
    %455 = vmax.xlane.f32.xlu0 %v370
    %v456 = vpop.xlane.xlu0 %455
    %457 = vmax.xlane.f32.xlu0 %v371
    %v458 = vpop.xlane.xlu0 %457
    %459 = vmax.xlane.f32.xlu0 %v372
    %v460 = vpop.xlane.xlu0 %459
    %461 = vmax.xlane.f32.xlu0 %v373
    %v462 = vpop.xlane.xlu0 %461
    %463 = vmax.xlane.f32.xlu0 %v374
    %v464 = vpop.xlane.xlu0 %463
    %465 = vmax.xlane.f32.xlu0 %v375
    %v466 = vpop.xlane.xlu0 %465
    %467 = vmax.xlane.f32.xlu0 %v376
    %v468 = vpop.xlane.xlu0 %467
    %469 = vmax.xlane.f32.xlu0 %v377
    %v470 = vpop.xlane.xlu0 %469
    %471 = vmax.xlane.f32.xlu0 %v378
    %v472 = vpop.xlane.xlu0 %471
    %473 = vmax.xlane.f32.xlu0 %v379
    %v474 = vpop.xlane.xlu0 %473
    %475 = vmax.xlane.f32.xlu0 %v380
    %v476 = vpop.xlane.xlu0 %475
    %477 = vmax.xlane.f32.xlu0 %v381
    %v478 = vpop.xlane.xlu0 %477
    %479 = vmax.xlane.f32.xlu0 %v382
    %v480 = vpop.xlane.xlu0 %479
    %481 = vmax.xlane.f32.xlu0 %v383
    %v482 = vpop.xlane.xlu0 %481
    %483 = vmax.xlane.f32.xlu0 %v384
    %v484 = vpop.xlane.xlu0 %483
    %485 = vmax.xlane.f32.xlu0 %v385
    %v486 = vpop.xlane.xlu0 %485
    %487 = vmax.xlane.f32.xlu0 %v386
    %v488 = vpop.xlane.xlu0 %487
    %489 = vmax.xlane.f32.xlu0 %v387
    %v490 = vpop.xlane.xlu0 %489
    %491 = vmax.xlane.f32.xlu0 %v388
    %v492 = vpop.xlane.xlu0 %491
    %493 = vmax.xlane.f32.xlu0 %v389
    %v494 = vpop.xlane.xlu0 %493
    %495 = vmax.xlane.f32.xlu0 %v390
    %v496 = vpop.xlane.xlu0 %495
    %497 = vmax.xlane.f32.xlu0 %v391
    %v498 = vpop.xlane.xlu0 %497
    %499 = vmax.xlane.f32.xlu0 %v392
    %v500 = vpop.xlane.xlu0 %499
    %501 = vmax.xlane.f32.xlu0 %v393
    %v502 = vpop.xlane.xlu0 %501
    %503 = vmax.xlane.f32.xlu0 %v394
    %v504 = vpop.xlane.xlu0 %503
    %505 = vmax.xlane.f32.xlu0 %v395
    %v506 = vpop.xlane.xlu0 %505
    %507 = vmax.xlane.f32.xlu0 %v396
    %v508 = vpop.xlane.xlu0 %507
    %509 = vmax.xlane.f32.xlu0 %v397
    %v510 = vpop.xlane.xlu0 %509
    %511 = vmax.xlane.f32.xlu0 %v398
    %v512 = vpop.xlane.xlu0 %511
    %513 = vmax.xlane.f32.xlu0 %v399
    %v514 = vpop.xlane.xlu0 %513
    %515 = vmax.xlane.f32.xlu0 %v400
    %v516 = vpop.xlane.xlu0 %515
    %517 = vmax.xlane.f32.xlu0 %v401
    %v518 = vpop.xlane.xlu0 %517
    %519 = vmax.xlane.f32.xlu0 %v402
    %v520 = vpop.xlane.xlu0 %519
    %521 = vmax.xlane.f32.xlu0 %v403
    %v522 = vpop.xlane.xlu0 %521
    %523 = vmax.xlane.f32.xlu0 %v404
    %v524 = vpop.xlane.xlu0 %523
    %525 = vmax.xlane.f32.xlu0 %v405
    %v526 = vpop.xlane.xlu0 %525
    %527 = vmax.xlane.f32.xlu0 %v406
    %v528 = vpop.xlane.xlu0 %527
    %529 = vmax.xlane.f32.xlu0 %v407
    %v530 = vpop.xlane.xlu0 %529
    %531 = vmax.xlane.f32.xlu0 %v408
    %v532 = vpop.xlane.xlu0 %531
    %533 = vmax.xlane.f32.xlu0 %v409
    %v534 = vpop.xlane.xlu0 %533
    %535 = vmax.xlane.f32.xlu0 %v410
    %v536 = vpop.xlane.xlu0 %535
    %537 = vmax.xlane.f32.xlu0 %v411
    %v538 = vpop.xlane.xlu0 %537
    %539 = vmax.xlane.f32.xlu0 %v412
    %v540 = vpop.xlane.xlu0 %539
    %vm541 = vcmp.eq.f32.partialorder %v349, %v414
    %vm542 = vcmp.eq.f32.partialorder %v350, %v416
    %vm543 = vcmp.eq.f32.partialorder %v351, %v418
    %vm544 = vcmp.eq.f32.partialorder %v352, %v420
    %vm545 = vcmp.eq.f32.partialorder %v353, %v422
    %vm546 = vcmp.eq.f32.partialorder %v354, %v424
    %vm547 = vcmp.eq.f32.partialorder %v355, %v426
    %vm548 = vcmp.eq.f32.partialorder %v356, %v428
    %vm549 = vcmp.eq.f32.partialorder %v357, %v430
    %vm550 = vcmp.eq.f32.partialorder %v358, %v432
    %vm551 = vcmp.eq.f32.partialorder %v359, %v434
    %vm552 = vcmp.eq.f32.partialorder %v360, %v436
    %vm553 = vcmp.eq.f32.partialorder %v361, %v438
    %vm554 = vcmp.eq.f32.partialorder %v362, %v440
    %vm555 = vcmp.eq.f32.partialorder %v363, %v442
    %vm556 = vcmp.eq.f32.partialorder %v364, %v444
    %vm557 = vcmp.eq.f32.partialorder %v365, %v446
    %vm558 = vcmp.eq.f32.partialorder %v366, %v448
    %vm559 = vcmp.eq.f32.partialorder %v367, %v450
    %vm560 = vcmp.eq.f32.partialorder %v368, %v452
    %vm561 = vcmp.eq.f32.partialorder %v369, %v454
    %vm562 = vcmp.eq.f32.partialorder %v370, %v456
    %vm563 = vcmp.eq.f32.partialorder %v371, %v458
    %vm564 = vcmp.eq.f32.partialorder %v372, %v460
    %vm565 = vcmp.eq.f32.partialorder %v373, %v462
    %vm566 = vcmp.eq.f32.partialorder %v374, %v464
    %vm567 = vcmp.eq.f32.partialorder %v375, %v466
    %vm568 = vcmp.eq.f32.partialorder %v376, %v468
    %vm569 = vcmp.eq.f32.partialorder %v377, %v470
    %vm570 = vcmp.eq.f32.partialorder %v378, %v472
    %vm571 = vcmp.eq.f32.partialorder %v379, %v474
    %vm572 = vcmp.eq.f32.partialorder %v380, %v476
    %vm573 = vcmp.eq.f32.partialorder %v381, %v478
    %vm574 = vcmp.eq.f32.partialorder %v382, %v480
    %vm575 = vcmp.eq.f32.partialorder %v383, %v482
    %vm576 = vcmp.eq.f32.partialorder %v384, %v484
    %vm577 = vcmp.eq.f32.partialorder %v385, %v486
    %vm578 = vcmp.eq.f32.partialorder %v386, %v488
    %vm579 = vcmp.eq.f32.partialorder %v387, %v490
    %vm580 = vcmp.eq.f32.partialorder %v388, %v492
    %vm581 = vcmp.eq.f32.partialorder %v389, %v494
    %vm582 = vcmp.eq.f32.partialorder %v390, %v496
    %vm583 = vcmp.eq.f32.partialorder %v391, %v498
    %vm584 = vcmp.eq.f32.partialorder %v392, %v500
    %vm585 = vcmp.eq.f32.partialorder %v393, %v502
    %vm586 = vcmp.eq.f32.partialorder %v394, %v504
    %vm587 = vcmp.eq.f32.partialorder %v395, %v506
    %vm588 = vcmp.eq.f32.partialorder %v396, %v508
    %vm589 = vcmp.eq.f32.partialorder %v397, %v510
    %vm590 = vcmp.eq.f32.partialorder %v398, %v512
    %vm591 = vcmp.eq.f32.partialorder %v399, %v514
    %vm592 = vcmp.eq.f32.partialorder %v400, %v516
    %vm593 = vcmp.eq.f32.partialorder %v401, %v518
    %vm594 = vcmp.eq.f32.partialorder %v402, %v520
    %vm595 = vcmp.eq.f32.partialorder %v403, %v522
    %vm596 = vcmp.eq.f32.partialorder %v404, %v524
    %vm597 = vcmp.eq.f32.partialorder %v405, %v526
    %vm598 = vcmp.eq.f32.partialorder %v406, %v528
    %vm599 = vcmp.eq.f32.partialorder %v407, %v530
    %vm600 = vcmp.eq.f32.partialorder %v408, %v532
    %vm601 = vcmp.eq.f32.partialorder %v409, %v534
    %vm602 = vcmp.eq.f32.partialorder %v410, %v536
    %vm603 = vcmp.eq.f32.partialorder %v411, %v538
    %vm604 = vcmp.eq.f32.partialorder %v412, %v540
    %v605 = vsel %vm541, %v43, 128
    %v606 = vsel %vm542, %v43, 128
    %v607 = vsel %vm543, %v43, 128
    %v608 = vsel %vm544, %v43, 128
    %v609 = vsel %vm545, %v43, 128
    %v610 = vsel %vm546, %v43, 128
    %v611 = vsel %vm547, %v43, 128
    %v612 = vsel %vm548, %v43, 128
    %v613 = vsel %vm549, %v43, 128
    %v614 = vsel %vm550, %v43, 128
    %v615 = vsel %vm551, %v43, 128
    %v616 = vsel %vm552, %v43, 128
    %v617 = vsel %vm553, %v43, 128
    %v618 = vsel %vm554, %v43, 128
    %v619 = vsel %vm555, %v43, 128
    %v620 = vsel %vm556, %v43, 128
    %v621 = vsel %vm557, %v43, 128
    %v622 = vsel %vm558, %v43, 128
    %v623 = vsel %vm559, %v43, 128
    %v624 = vsel %vm560, %v43, 128
    %v625 = vsel %vm561, %v43, 128
    %v626 = vsel %vm562, %v43, 128
    %v627 = vsel %vm563, %v43, 128
    %v628 = vsel %vm564, %v43, 128
    %v629 = vsel %vm565, %v43, 128
    %v630 = vsel %vm566, %v43, 128
    %v631 = vsel %vm567, %v43, 128
    %v632 = vsel %vm568, %v43, 128
    %v633 = vsel %vm569, %v43, 128
    %v634 = vsel %vm570, %v43, 128
    %v635 = vsel %vm571, %v43, 128
    %v636 = vsel %vm572, %v43, 128
    %v637 = vsel %vm573, %v43, 128
    %v638 = vsel %vm574, %v43, 128
    %v639 = vsel %vm575, %v43, 128
    %v640 = vsel %vm576, %v43, 128
    %v641 = vsel %vm577, %v43, 128
    %v642 = vsel %vm578, %v43, 128
    %v643 = vsel %vm579, %v43, 128
    %v644 = vsel %vm580, %v43, 128
    %v645 = vsel %vm581, %v43, 128
    %v646 = vsel %vm582, %v43, 128
    %v647 = vsel %vm583, %v43, 128
    %v648 = vsel %vm584, %v43, 128
    %v649 = vsel %vm585, %v43, 128
    %v650 = vsel %vm586, %v43, 128
    %v651 = vsel %vm587, %v43, 128
    %v652 = vsel %vm588, %v43, 128
    %v653 = vsel %vm589, %v43, 128
    %v654 = vsel %vm590, %v43, 128
    %v655 = vsel %vm591, %v43, 128
    %v656 = vsel %vm592, %v43, 128
    %v657 = vsel %vm593, %v43, 128
    %v658 = vsel %vm594, %v43, 128
    %v659 = vsel %vm595, %v43, 128
    %v660 = vsel %vm596, %v43, 128
    %v661 = vsel %vm597, %v43, 128
    %v662 = vsel %vm598, %v43, 128
    %v663 = vsel %vm599, %v43, 128
    %v664 = vsel %vm600, %v43, 128
    %v665 = vsel %vm601, %v43, 128
    %v666 = vsel %vm602, %v43, 128
    %v667 = vsel %vm603, %v43, 128
    %v668 = vsel %vm604, %v43, 128
    %v669 = vand.u32 %v605, 65535
    %v670 = vshra.s32 %v605, 16
    %v671 = vcvt.s32.f32 %v669
    %v672 = vcvt.s32.f32 %v670
    %673 = vmin.xlane.f32.xlu0 %v672
    %v674 = vpop.xlane.xlu0 %673
    %vm675 = vcmp.eq.f32.partialorder %v672, %v674
    %v676 = vsel %vm675, %v671, inf
    %677 = vmin.xlane.f32.xlu0 %v676
    %v678 = vpop.xlane.xlu0 %677
    %v679 = vcvt.f32.s32 %v678
    %v680 = vcvt.f32.s32 %v674
    %v681 = vshll.u32 %v680, 16
    %v682 = vadd.s32 %v681, %v679
    %v683 = vand.u32 %v606, 65535
    %v684 = vshra.s32 %v606, 16
    %v685 = vcvt.s32.f32 %v683
    %v686 = vcvt.s32.f32 %v684
    %687 = vmin.xlane.f32.xlu0 %v686
    %v688 = vpop.xlane.xlu0 %687
    %vm689 = vcmp.eq.f32.partialorder %v686, %v688
    %v690 = vsel %vm689, %v685, inf
    %691 = vmin.xlane.f32.xlu0 %v690
    %v692 = vpop.xlane.xlu0 %691
    %v693 = vcvt.f32.s32 %v692
    %v694 = vcvt.f32.s32 %v688
    %v695 = vshll.u32 %v694, 16
    %v696 = vadd.s32 %v695, %v693
    %v697 = vand.u32 %v607, 65535
    %v698 = vshra.s32 %v607, 16
    %v699 = vcvt.s32.f32 %v697
    %v700 = vcvt.s32.f32 %v698
    %701 = vmin.xlane.f32.xlu0 %v700
    %v702 = vpop.xlane.xlu0 %701
    %vm703 = vcmp.eq.f32.partialorder %v700, %v702
    %v704 = vsel %vm703, %v699, inf
    %705 = vmin.xlane.f32.xlu0 %v704
    %v706 = vpop.xlane.xlu0 %705
    %v707 = vcvt.f32.s32 %v706
    %v708 = vcvt.f32.s32 %v702
    %v709 = vshll.u32 %v708, 16
    %v710 = vadd.s32 %v709, %v707
    %v711 = vand.u32 %v608, 65535
    %v712 = vshra.s32 %v608, 16
    %v713 = vcvt.s32.f32 %v711
    %v714 = vcvt.s32.f32 %v712
    %715 = vmin.xlane.f32.xlu0 %v714
    %v716 = vpop.xlane.xlu0 %715
    %vm717 = vcmp.eq.f32.partialorder %v714, %v716
    %v718 = vsel %vm717, %v713, inf
    %719 = vmin.xlane.f32.xlu0 %v718
    %v720 = vpop.xlane.xlu0 %719
    %v721 = vcvt.f32.s32 %v720
    %v722 = vcvt.f32.s32 %v716
    %v723 = vshll.u32 %v722, 16
    %v724 = vadd.s32 %v723, %v721
    %v725 = vand.u32 %v609, 65535
    %v726 = vshra.s32 %v609, 16
    %v727 = vcvt.s32.f32 %v725
    %v728 = vcvt.s32.f32 %v726
    %729 = vmin.xlane.f32.xlu0 %v728
    %v730 = vpop.xlane.xlu0 %729
    %vm731 = vcmp.eq.f32.partialorder %v728, %v730
    %v732 = vsel %vm731, %v727, inf
    %733 = vmin.xlane.f32.xlu0 %v732
    %v734 = vpop.xlane.xlu0 %733
    %v735 = vcvt.f32.s32 %v734
    %v736 = vcvt.f32.s32 %v730
    %v737 = vshll.u32 %v736, 16
    %v738 = vadd.s32 %v737, %v735
    %v739 = vand.u32 %v610, 65535
    %v740 = vshra.s32 %v610, 16
    %v741 = vcvt.s32.f32 %v739
    %v742 = vcvt.s32.f32 %v740
    %743 = vmin.xlane.f32.xlu0 %v742
    %v744 = vpop.xlane.xlu0 %743
    %vm745 = vcmp.eq.f32.partialorder %v742, %v744
    %v746 = vsel %vm745, %v741, inf
    %747 = vmin.xlane.f32.xlu0 %v746
    %v748 = vpop.xlane.xlu0 %747
    %v749 = vcvt.f32.s32 %v748
    %v750 = vcvt.f32.s32 %v744
    %v751 = vshll.u32 %v750, 16
    %v752 = vadd.s32 %v751, %v749
    %v753 = vand.u32 %v611, 65535
    %v754 = vshra.s32 %v611, 16
    %v755 = vcvt.s32.f32 %v753
    %v756 = vcvt.s32.f32 %v754
    %757 = vmin.xlane.f32.xlu0 %v756
    %v758 = vpop.xlane.xlu0 %757
    %vm759 = vcmp.eq.f32.partialorder %v756, %v758
    %v760 = vsel %vm759, %v755, inf
    %761 = vmin.xlane.f32.xlu0 %v760
    %v762 = vpop.xlane.xlu0 %761
    %v763 = vcvt.f32.s32 %v762
    %v764 = vcvt.f32.s32 %v758
    %v765 = vshll.u32 %v764, 16
    %v766 = vadd.s32 %v765, %v763
    %v767 = vand.u32 %v612, 65535
    %v768 = vshra.s32 %v612, 16
    %v769 = vcvt.s32.f32 %v767
    %v770 = vcvt.s32.f32 %v768
    %771 = vmin.xlane.f32.xlu0 %v770
    %v772 = vpop.xlane.xlu0 %771
    %vm773 = vcmp.eq.f32.partialorder %v770, %v772
    %v774 = vsel %vm773, %v769, inf
    %775 = vmin.xlane.f32.xlu0 %v774
    %v776 = vpop.xlane.xlu0 %775
    %v777 = vcvt.f32.s32 %v776
    %v778 = vcvt.f32.s32 %v772
    %v779 = vshll.u32 %v778, 16
    %v780 = vadd.s32 %v779, %v777
    %v781 = vand.u32 %v613, 65535
    %v782 = vshra.s32 %v613, 16
    %v783 = vcvt.s32.f32 %v781
    %v784 = vcvt.s32.f32 %v782
    %785 = vmin.xlane.f32.xlu0 %v784
    %v786 = vpop.xlane.xlu0 %785
    %vm787 = vcmp.eq.f32.partialorder %v784, %v786
    %v788 = vsel %vm787, %v783, inf
    %789 = vmin.xlane.f32.xlu0 %v788
    %v790 = vpop.xlane.xlu0 %789
    %v791 = vcvt.f32.s32 %v790
    %v792 = vcvt.f32.s32 %v786
    %v793 = vshll.u32 %v792, 16
    %v794 = vadd.s32 %v793, %v791
    %v795 = vand.u32 %v614, 65535
    %v796 = vshra.s32 %v614, 16
    %v797 = vcvt.s32.f32 %v795
    %v798 = vcvt.s32.f32 %v796
    %799 = vmin.xlane.f32.xlu0 %v798
    %v800 = vpop.xlane.xlu0 %799
    %vm801 = vcmp.eq.f32.partialorder %v798, %v800
    %v802 = vsel %vm801, %v797, inf
    %803 = vmin.xlane.f32.xlu0 %v802
    %v804 = vpop.xlane.xlu0 %803
    %v805 = vcvt.f32.s32 %v804
    %v806 = vcvt.f32.s32 %v800
    %v807 = vshll.u32 %v806, 16
    %v808 = vadd.s32 %v807, %v805
    %v809 = vand.u32 %v615, 65535
    %v810 = vshra.s32 %v615, 16
    %v811 = vcvt.s32.f32 %v809
    %v812 = vcvt.s32.f32 %v810
    %813 = vmin.xlane.f32.xlu0 %v812
    %v814 = vpop.xlane.xlu0 %813
    %vm815 = vcmp.eq.f32.partialorder %v812, %v814
    %v816 = vsel %vm815, %v811, inf
    %817 = vmin.xlane.f32.xlu0 %v816
    %v818 = vpop.xlane.xlu0 %817
    %v819 = vcvt.f32.s32 %v818
    %v820 = vcvt.f32.s32 %v814
    %v821 = vshll.u32 %v820, 16
    %v822 = vadd.s32 %v821, %v819
    %v823 = vand.u32 %v616, 65535
    %v824 = vshra.s32 %v616, 16
    %v825 = vcvt.s32.f32 %v823
    %v826 = vcvt.s32.f32 %v824
    %827 = vmin.xlane.f32.xlu0 %v826
    %v828 = vpop.xlane.xlu0 %827
    %vm829 = vcmp.eq.f32.partialorder %v826, %v828
    %v830 = vsel %vm829, %v825, inf
    %831 = vmin.xlane.f32.xlu0 %v830
    %v832 = vpop.xlane.xlu0 %831
    %v833 = vcvt.f32.s32 %v832
    %v834 = vcvt.f32.s32 %v828
    %v835 = vshll.u32 %v834, 16
    %v836 = vadd.s32 %v835, %v833
    %v837 = vand.u32 %v617, 65535
    %v838 = vshra.s32 %v617, 16
    %v839 = vcvt.s32.f32 %v837
    %v840 = vcvt.s32.f32 %v838
    %841 = vmin.xlane.f32.xlu0 %v840
    %v842 = vpop.xlane.xlu0 %841
    %vm843 = vcmp.eq.f32.partialorder %v840, %v842
    %v844 = vsel %vm843, %v839, inf
    %845 = vmin.xlane.f32.xlu0 %v844
    %v846 = vpop.xlane.xlu0 %845
    %v847 = vcvt.f32.s32 %v846
    %v848 = vcvt.f32.s32 %v842
    %v849 = vshll.u32 %v848, 16
    %v850 = vadd.s32 %v849, %v847
    %v851 = vand.u32 %v618, 65535
    %v852 = vshra.s32 %v618, 16
    %v853 = vcvt.s32.f32 %v851
    %v854 = vcvt.s32.f32 %v852
    %855 = vmin.xlane.f32.xlu0 %v854
    %v856 = vpop.xlane.xlu0 %855
    %vm857 = vcmp.eq.f32.partialorder %v854, %v856
    %v858 = vsel %vm857, %v853, inf
    %859 = vmin.xlane.f32.xlu0 %v858
    %v860 = vpop.xlane.xlu0 %859
    %v861 = vcvt.f32.s32 %v860
    %v862 = vcvt.f32.s32 %v856
    %v863 = vshll.u32 %v862, 16
    %v864 = vadd.s32 %v863, %v861
    %v865 = vand.u32 %v619, 65535
    %v866 = vshra.s32 %v619, 16
    %v867 = vcvt.s32.f32 %v865
    %v868 = vcvt.s32.f32 %v866
    %869 = vmin.xlane.f32.xlu0 %v868
    %v870 = vpop.xlane.xlu0 %869
    %vm871 = vcmp.eq.f32.partialorder %v868, %v870
    %v872 = vsel %vm871, %v867, inf
    %873 = vmin.xlane.f32.xlu0 %v872
    %v874 = vpop.xlane.xlu0 %873
    %v875 = vcvt.f32.s32 %v874
    %v876 = vcvt.f32.s32 %v870
    %v877 = vshll.u32 %v876, 16
    %v878 = vadd.s32 %v877, %v875
    %v879 = vand.u32 %v620, 65535
    %v880 = vshra.s32 %v620, 16
    %v881 = vcvt.s32.f32 %v879
    %v882 = vcvt.s32.f32 %v880
    %883 = vmin.xlane.f32.xlu0 %v882
    %v884 = vpop.xlane.xlu0 %883
    %vm885 = vcmp.eq.f32.partialorder %v882, %v884
    %v886 = vsel %vm885, %v881, inf
    %887 = vmin.xlane.f32.xlu0 %v886
    %v888 = vpop.xlane.xlu0 %887
    %v889 = vcvt.f32.s32 %v888
    %v890 = vcvt.f32.s32 %v884
    %v891 = vshll.u32 %v890, 16
    %v892 = vadd.s32 %v891, %v889
    %v893 = vand.u32 %v621, 65535
    %v894 = vshra.s32 %v621, 16
    %v895 = vcvt.s32.f32 %v893
    %v896 = vcvt.s32.f32 %v894
    %897 = vmin.xlane.f32.xlu0 %v896
    %v898 = vpop.xlane.xlu0 %897
    %vm899 = vcmp.eq.f32.partialorder %v896, %v898
    %v900 = vsel %vm899, %v895, inf
    %901 = vmin.xlane.f32.xlu0 %v900
    %v902 = vpop.xlane.xlu0 %901
    %v903 = vcvt.f32.s32 %v902
    %v904 = vcvt.f32.s32 %v898
    %v905 = vshll.u32 %v904, 16
    %v906 = vadd.s32 %v905, %v903
    %v907 = vand.u32 %v622, 65535
    %v908 = vshra.s32 %v622, 16
    %v909 = vcvt.s32.f32 %v907
    %v910 = vcvt.s32.f32 %v908
    %911 = vmin.xlane.f32.xlu0 %v910
    %v912 = vpop.xlane.xlu0 %911
    %vm913 = vcmp.eq.f32.partialorder %v910, %v912
    %v914 = vsel %vm913, %v909, inf
    %915 = vmin.xlane.f32.xlu0 %v914
    %v916 = vpop.xlane.xlu0 %915
    %v917 = vcvt.f32.s32 %v916
    %v918 = vcvt.f32.s32 %v912
    %v919 = vshll.u32 %v918, 16
    %v920 = vadd.s32 %v919, %v917
    %v921 = vand.u32 %v623, 65535
    %v922 = vshra.s32 %v623, 16
    %v923 = vcvt.s32.f32 %v921
    %v924 = vcvt.s32.f32 %v922
    %925 = vmin.xlane.f32.xlu0 %v924
    %v926 = vpop.xlane.xlu0 %925
    %vm927 = vcmp.eq.f32.partialorder %v924, %v926
    %v928 = vsel %vm927, %v923, inf
    %929 = vmin.xlane.f32.xlu0 %v928
    %v930 = vpop.xlane.xlu0 %929
    %v931 = vcvt.f32.s32 %v930
    %v932 = vcvt.f32.s32 %v926
    %v933 = vshll.u32 %v932, 16
    %v934 = vadd.s32 %v933, %v931
    %v935 = vand.u32 %v624, 65535
    %v936 = vshra.s32 %v624, 16
    %v937 = vcvt.s32.f32 %v935
    %v938 = vcvt.s32.f32 %v936
    %939 = vmin.xlane.f32.xlu0 %v938
    %v940 = vpop.xlane.xlu0 %939
    %vm941 = vcmp.eq.f32.partialorder %v938, %v940
    %v942 = vsel %vm941, %v937, inf
    %943 = vmin.xlane.f32.xlu0 %v942
    %v944 = vpop.xlane.xlu0 %943
    %v945 = vcvt.f32.s32 %v944
    %v946 = vcvt.f32.s32 %v940
    %v947 = vshll.u32 %v946, 16
    %v948 = vadd.s32 %v947, %v945
    %v949 = vand.u32 %v625, 65535
    %v950 = vshra.s32 %v625, 16
    %v951 = vcvt.s32.f32 %v949
    %v952 = vcvt.s32.f32 %v950
    %953 = vmin.xlane.f32.xlu0 %v952
    %v954 = vpop.xlane.xlu0 %953
    %vm955 = vcmp.eq.f32.partialorder %v952, %v954
    %v956 = vsel %vm955, %v951, inf
    %957 = vmin.xlane.f32.xlu0 %v956
    %v958 = vpop.xlane.xlu0 %957
    %v959 = vcvt.f32.s32 %v958
    %v960 = vcvt.f32.s32 %v954
    %v961 = vshll.u32 %v960, 16
    %v962 = vadd.s32 %v961, %v959
    %v963 = vand.u32 %v626, 65535
    %v964 = vshra.s32 %v626, 16
    %v965 = vcvt.s32.f32 %v963
    %v966 = vcvt.s32.f32 %v964
    %967 = vmin.xlane.f32.xlu0 %v966
    %v968 = vpop.xlane.xlu0 %967
    %vm969 = vcmp.eq.f32.partialorder %v966, %v968
    %v970 = vsel %vm969, %v965, inf
    %971 = vmin.xlane.f32.xlu0 %v970
    %v972 = vpop.xlane.xlu0 %971
    %v973 = vcvt.f32.s32 %v972
    %v974 = vcvt.f32.s32 %v968
    %v975 = vshll.u32 %v974, 16
    %v976 = vadd.s32 %v975, %v973
    %v977 = vand.u32 %v627, 65535
    %v978 = vshra.s32 %v627, 16
    %v979 = vcvt.s32.f32 %v977
    %v980 = vcvt.s32.f32 %v978
    %981 = vmin.xlane.f32.xlu0 %v980
    %v982 = vpop.xlane.xlu0 %981
    %vm983 = vcmp.eq.f32.partialorder %v980, %v982
    %v984 = vsel %vm983, %v979, inf
    %985 = vmin.xlane.f32.xlu0 %v984
    %v986 = vpop.xlane.xlu0 %985
    %v987 = vcvt.f32.s32 %v986
    %v988 = vcvt.f32.s32 %v982
    %v989 = vshll.u32 %v988, 16
    %v990 = vadd.s32 %v989, %v987
    %v991 = vand.u32 %v628, 65535
    %v992 = vshra.s32 %v628, 16
    %v993 = vcvt.s32.f32 %v991
    %v994 = vcvt.s32.f32 %v992
    %995 = vmin.xlane.f32.xlu0 %v994
    %v996 = vpop.xlane.xlu0 %995
    %vm997 = vcmp.eq.f32.partialorder %v994, %v996
    %v998 = vsel %vm997, %v993, inf
    %999 = vmin.xlane.f32.xlu0 %v998
    %v1000 = vpop.xlane.xlu0 %999
    %v1001 = vcvt.f32.s32 %v1000
    %v1002 = vcvt.f32.s32 %v996
    %v1003 = vshll.u32 %v1002, 16
    %v1004 = vadd.s32 %v1003, %v1001
    %v1005 = vand.u32 %v629, 65535
    %v1006 = vshra.s32 %v629, 16
    %v1007 = vcvt.s32.f32 %v1005
    %v1008 = vcvt.s32.f32 %v1006
    %1009 = vmin.xlane.f32.xlu0 %v1008
    %v1010 = vpop.xlane.xlu0 %1009
    %vm1011 = vcmp.eq.f32.partialorder %v1008, %v1010
    %v1012 = vsel %vm1011, %v1007, inf
    %1013 = vmin.xlane.f32.xlu0 %v1012
    %v1014 = vpop.xlane.xlu0 %1013
    %v1015 = vcvt.f32.s32 %v1014
    %v1016 = vcvt.f32.s32 %v1010
    %v1017 = vshll.u32 %v1016, 16
    %v1018 = vadd.s32 %v1017, %v1015
    %v1019 = vand.u32 %v630, 65535
    %v1020 = vshra.s32 %v630, 16
    %v1021 = vcvt.s32.f32 %v1019
    %v1022 = vcvt.s32.f32 %v1020
    %1023 = vmin.xlane.f32.xlu0 %v1022
    %v1024 = vpop.xlane.xlu0 %1023
    %vm1025 = vcmp.eq.f32.partialorder %v1022, %v1024
    %v1026 = vsel %vm1025, %v1021, inf
    %1027 = vmin.xlane.f32.xlu0 %v1026
    %v1028 = vpop.xlane.xlu0 %1027
    %v1029 = vcvt.f32.s32 %v1028
    %v1030 = vcvt.f32.s32 %v1024
    %v1031 = vshll.u32 %v1030, 16
    %v1032 = vadd.s32 %v1031, %v1029
    %v1033 = vand.u32 %v631, 65535
    %v1034 = vshra.s32 %v631, 16
    %v1035 = vcvt.s32.f32 %v1033
    %v1036 = vcvt.s32.f32 %v1034
    %1037 = vmin.xlane.f32.xlu0 %v1036
    %v1038 = vpop.xlane.xlu0 %1037
    %vm1039 = vcmp.eq.f32.partialorder %v1036, %v1038
    %v1040 = vsel %vm1039, %v1035, inf
    %1041 = vmin.xlane.f32.xlu0 %v1040
    %v1042 = vpop.xlane.xlu0 %1041
    %v1043 = vcvt.f32.s32 %v1042
    %v1044 = vcvt.f32.s32 %v1038
    %v1045 = vshll.u32 %v1044, 16
    %v1046 = vadd.s32 %v1045, %v1043
    %v1047 = vand.u32 %v632, 65535
    %v1048 = vshra.s32 %v632, 16
    %v1049 = vcvt.s32.f32 %v1047
    %v1050 = vcvt.s32.f32 %v1048
    %1051 = vmin.xlane.f32.xlu0 %v1050
    %v1052 = vpop.xlane.xlu0 %1051
    %vm1053 = vcmp.eq.f32.partialorder %v1050, %v1052
    %v1054 = vsel %vm1053, %v1049, inf
    %1055 = vmin.xlane.f32.xlu0 %v1054
    %v1056 = vpop.xlane.xlu0 %1055
    %v1057 = vcvt.f32.s32 %v1056
    %v1058 = vcvt.f32.s32 %v1052
    %v1059 = vshll.u32 %v1058, 16
    %v1060 = vadd.s32 %v1059, %v1057
    %v1061 = vand.u32 %v633, 65535
    %v1062 = vshra.s32 %v633, 16
    %v1063 = vcvt.s32.f32 %v1061
    %v1064 = vcvt.s32.f32 %v1062
    %1065 = vmin.xlane.f32.xlu0 %v1064
    %v1066 = vpop.xlane.xlu0 %1065
    %vm1067 = vcmp.eq.f32.partialorder %v1064, %v1066
    %v1068 = vsel %vm1067, %v1063, inf
    %1069 = vmin.xlane.f32.xlu0 %v1068
    %v1070 = vpop.xlane.xlu0 %1069
    %v1071 = vcvt.f32.s32 %v1070
    %v1072 = vcvt.f32.s32 %v1066
    %v1073 = vshll.u32 %v1072, 16
    %v1074 = vadd.s32 %v1073, %v1071
    %v1075 = vand.u32 %v634, 65535
    %v1076 = vshra.s32 %v634, 16
    %v1077 = vcvt.s32.f32 %v1075
    %v1078 = vcvt.s32.f32 %v1076
    %1079 = vmin.xlane.f32.xlu0 %v1078
    %v1080 = vpop.xlane.xlu0 %1079
    %vm1081 = vcmp.eq.f32.partialorder %v1078, %v1080
    %v1082 = vsel %vm1081, %v1077, inf
    %1083 = vmin.xlane.f32.xlu0 %v1082
    %v1084 = vpop.xlane.xlu0 %1083
    %v1085 = vcvt.f32.s32 %v1084
    %v1086 = vcvt.f32.s32 %v1080
    %v1087 = vshll.u32 %v1086, 16
    %v1088 = vadd.s32 %v1087, %v1085
    %v1089 = vand.u32 %v635, 65535
    %v1090 = vshra.s32 %v635, 16
    %v1091 = vcvt.s32.f32 %v1089
    %v1092 = vcvt.s32.f32 %v1090
    %1093 = vmin.xlane.f32.xlu0 %v1092
    %v1094 = vpop.xlane.xlu0 %1093
    %vm1095 = vcmp.eq.f32.partialorder %v1092, %v1094
    %v1096 = vsel %vm1095, %v1091, inf
    %1097 = vmin.xlane.f32.xlu0 %v1096
    %v1098 = vpop.xlane.xlu0 %1097
    %v1099 = vcvt.f32.s32 %v1098
    %v1100 = vcvt.f32.s32 %v1094
    %v1101 = vshll.u32 %v1100, 16
    %v1102 = vadd.s32 %v1101, %v1099
    %v1103 = vand.u32 %v636, 65535
    %v1104 = vshra.s32 %v636, 16
    %v1105 = vcvt.s32.f32 %v1103
    %v1106 = vcvt.s32.f32 %v1104
    %1107 = vmin.xlane.f32.xlu0 %v1106
    %v1108 = vpop.xlane.xlu0 %1107
    %vm1109 = vcmp.eq.f32.partialorder %v1106, %v1108
    %v1110 = vsel %vm1109, %v1105, inf
    %1111 = vmin.xlane.f32.xlu0 %v1110
    %v1112 = vpop.xlane.xlu0 %1111
    %v1113 = vcvt.f32.s32 %v1112
    %v1114 = vcvt.f32.s32 %v1108
    %v1115 = vshll.u32 %v1114, 16
    %v1116 = vadd.s32 %v1115, %v1113
    %v1117 = vand.u32 %v637, 65535
    %v1118 = vshra.s32 %v637, 16
    %v1119 = vcvt.s32.f32 %v1117
    %v1120 = vcvt.s32.f32 %v1118
    %1121 = vmin.xlane.f32.xlu0 %v1120
    %v1122 = vpop.xlane.xlu0 %1121
    %vm1123 = vcmp.eq.f32.partialorder %v1120, %v1122
    %v1124 = vsel %vm1123, %v1119, inf
    %1125 = vmin.xlane.f32.xlu0 %v1124
    %v1126 = vpop.xlane.xlu0 %1125
    %v1127 = vcvt.f32.s32 %v1126
    %v1128 = vcvt.f32.s32 %v1122
    %v1129 = vshll.u32 %v1128, 16
    %v1130 = vadd.s32 %v1129, %v1127
    %v1131 = vand.u32 %v638, 65535
    %v1132 = vshra.s32 %v638, 16
    %v1133 = vcvt.s32.f32 %v1131
    %v1134 = vcvt.s32.f32 %v1132
    %1135 = vmin.xlane.f32.xlu0 %v1134
    %v1136 = vpop.xlane.xlu0 %1135
    %vm1137 = vcmp.eq.f32.partialorder %v1134, %v1136
    %v1138 = vsel %vm1137, %v1133, inf
    %1139 = vmin.xlane.f32.xlu0 %v1138
    %v1140 = vpop.xlane.xlu0 %1139
    %v1141 = vcvt.f32.s32 %v1140
    %v1142 = vcvt.f32.s32 %v1136
    %v1143 = vshll.u32 %v1142, 16
    %v1144 = vadd.s32 %v1143, %v1141
    %v1145 = vand.u32 %v639, 65535
    %v1146 = vshra.s32 %v639, 16
    %v1147 = vcvt.s32.f32 %v1145
    %v1148 = vcvt.s32.f32 %v1146
    %1149 = vmin.xlane.f32.xlu0 %v1148
    %v1150 = vpop.xlane.xlu0 %1149
    %vm1151 = vcmp.eq.f32.partialorder %v1148, %v1150
    %v1152 = vsel %vm1151, %v1147, inf
    %1153 = vmin.xlane.f32.xlu0 %v1152
    %v1154 = vpop.xlane.xlu0 %1153
    %v1155 = vcvt.f32.s32 %v1154
    %v1156 = vcvt.f32.s32 %v1150
    %v1157 = vshll.u32 %v1156, 16
    %v1158 = vadd.s32 %v1157, %v1155
    %v1159 = vand.u32 %v640, 65535
    %v1160 = vshra.s32 %v640, 16
    %v1161 = vcvt.s32.f32 %v1159
    %v1162 = vcvt.s32.f32 %v1160
    %1163 = vmin.xlane.f32.xlu0 %v1162
    %v1164 = vpop.xlane.xlu0 %1163
    %vm1165 = vcmp.eq.f32.partialorder %v1162, %v1164
    %v1166 = vsel %vm1165, %v1161, inf
    %1167 = vmin.xlane.f32.xlu0 %v1166
    %v1168 = vpop.xlane.xlu0 %1167
    %v1169 = vcvt.f32.s32 %v1168
    %v1170 = vcvt.f32.s32 %v1164
    %v1171 = vshll.u32 %v1170, 16
    %v1172 = vadd.s32 %v1171, %v1169
    %v1173 = vand.u32 %v641, 65535
    %v1174 = vshra.s32 %v641, 16
    %v1175 = vcvt.s32.f32 %v1173
    %v1176 = vcvt.s32.f32 %v1174
    %1177 = vmin.xlane.f32.xlu0 %v1176
    %v1178 = vpop.xlane.xlu0 %1177
    %vm1179 = vcmp.eq.f32.partialorder %v1176, %v1178
    %v1180 = vsel %vm1179, %v1175, inf
    %1181 = vmin.xlane.f32.xlu0 %v1180
    %v1182 = vpop.xlane.xlu0 %1181
    %v1183 = vcvt.f32.s32 %v1182
    %v1184 = vcvt.f32.s32 %v1178
    %v1185 = vshll.u32 %v1184, 16
    %v1186 = vadd.s32 %v1185, %v1183
    %v1187 = vand.u32 %v642, 65535
    %v1188 = vshra.s32 %v642, 16
    %v1189 = vcvt.s32.f32 %v1187
    %v1190 = vcvt.s32.f32 %v1188
    %1191 = vmin.xlane.f32.xlu0 %v1190
    %v1192 = vpop.xlane.xlu0 %1191
    %vm1193 = vcmp.eq.f32.partialorder %v1190, %v1192
    %v1194 = vsel %vm1193, %v1189, inf
    %1195 = vmin.xlane.f32.xlu0 %v1194
    %v1196 = vpop.xlane.xlu0 %1195
    %v1197 = vcvt.f32.s32 %v1196
    %v1198 = vcvt.f32.s32 %v1192
    %v1199 = vshll.u32 %v1198, 16
    %v1200 = vadd.s32 %v1199, %v1197
    %v1201 = vand.u32 %v643, 65535
    %v1202 = vshra.s32 %v643, 16
    %v1203 = vcvt.s32.f32 %v1201
    %v1204 = vcvt.s32.f32 %v1202
    %1205 = vmin.xlane.f32.xlu0 %v1204
    %v1206 = vpop.xlane.xlu0 %1205
    %vm1207 = vcmp.eq.f32.partialorder %v1204, %v1206
    %v1208 = vsel %vm1207, %v1203, inf
    %1209 = vmin.xlane.f32.xlu0 %v1208
    %v1210 = vpop.xlane.xlu0 %1209
    %v1211 = vcvt.f32.s32 %v1210
    %v1212 = vcvt.f32.s32 %v1206
    %v1213 = vshll.u32 %v1212, 16
    %v1214 = vadd.s32 %v1213, %v1211
    %v1215 = vand.u32 %v644, 65535
    %v1216 = vshra.s32 %v644, 16
    %v1217 = vcvt.s32.f32 %v1215
    %v1218 = vcvt.s32.f32 %v1216
    %1219 = vmin.xlane.f32.xlu0 %v1218
    %v1220 = vpop.xlane.xlu0 %1219
    %vm1221 = vcmp.eq.f32.partialorder %v1218, %v1220
    %v1222 = vsel %vm1221, %v1217, inf
    %1223 = vmin.xlane.f32.xlu0 %v1222
    %v1224 = vpop.xlane.xlu0 %1223
    %v1225 = vcvt.f32.s32 %v1224
    %v1226 = vcvt.f32.s32 %v1220
    %v1227 = vshll.u32 %v1226, 16
    %v1228 = vadd.s32 %v1227, %v1225
    %v1229 = vand.u32 %v645, 65535
    %v1230 = vshra.s32 %v645, 16
    %v1231 = vcvt.s32.f32 %v1229
    %v1232 = vcvt.s32.f32 %v1230
    %1233 = vmin.xlane.f32.xlu0 %v1232
    %v1234 = vpop.xlane.xlu0 %1233
    %vm1235 = vcmp.eq.f32.partialorder %v1232, %v1234
    %v1236 = vsel %vm1235, %v1231, inf
    %1237 = vmin.xlane.f32.xlu0 %v1236
    %v1238 = vpop.xlane.xlu0 %1237
    %v1239 = vcvt.f32.s32 %v1238
    %v1240 = vcvt.f32.s32 %v1234
    %v1241 = vshll.u32 %v1240, 16
    %v1242 = vadd.s32 %v1241, %v1239
    %v1243 = vand.u32 %v646, 65535
    %v1244 = vshra.s32 %v646, 16
    %v1245 = vcvt.s32.f32 %v1243
    %v1246 = vcvt.s32.f32 %v1244
    %1247 = vmin.xlane.f32.xlu0 %v1246
    %v1248 = vpop.xlane.xlu0 %1247
    %vm1249 = vcmp.eq.f32.partialorder %v1246, %v1248
    %v1250 = vsel %vm1249, %v1245, inf
    %1251 = vmin.xlane.f32.xlu0 %v1250
    %v1252 = vpop.xlane.xlu0 %1251
    %v1253 = vcvt.f32.s32 %v1252
    %v1254 = vcvt.f32.s32 %v1248
    %v1255 = vshll.u32 %v1254, 16
    %v1256 = vadd.s32 %v1255, %v1253
    %v1257 = vand.u32 %v647, 65535
    %v1258 = vshra.s32 %v647, 16
    %v1259 = vcvt.s32.f32 %v1257
    %v1260 = vcvt.s32.f32 %v1258
    %1261 = vmin.xlane.f32.xlu0 %v1260
    %v1262 = vpop.xlane.xlu0 %1261
    %vm1263 = vcmp.eq.f32.partialorder %v1260, %v1262
    %v1264 = vsel %vm1263, %v1259, inf
    %1265 = vmin.xlane.f32.xlu0 %v1264
    %v1266 = vpop.xlane.xlu0 %1265
    %v1267 = vcvt.f32.s32 %v1266
    %v1268 = vcvt.f32.s32 %v1262
    %v1269 = vshll.u32 %v1268, 16
    %v1270 = vadd.s32 %v1269, %v1267
    %v1271 = vand.u32 %v648, 65535
    %v1272 = vshra.s32 %v648, 16
    %v1273 = vcvt.s32.f32 %v1271
    %v1274 = vcvt.s32.f32 %v1272
    %1275 = vmin.xlane.f32.xlu0 %v1274
    %v1276 = vpop.xlane.xlu0 %1275
    %vm1277 = vcmp.eq.f32.partialorder %v1274, %v1276
    %v1278 = vsel %vm1277, %v1273, inf
    %1279 = vmin.xlane.f32.xlu0 %v1278
    %v1280 = vpop.xlane.xlu0 %1279
    %v1281 = vcvt.f32.s32 %v1280
    %v1282 = vcvt.f32.s32 %v1276
    %v1283 = vshll.u32 %v1282, 16
    %v1284 = vadd.s32 %v1283, %v1281
    %v1285 = vand.u32 %v649, 65535
    %v1286 = vshra.s32 %v649, 16
    %v1287 = vcvt.s32.f32 %v1285
    %v1288 = vcvt.s32.f32 %v1286
    %1289 = vmin.xlane.f32.xlu0 %v1288
    %v1290 = vpop.xlane.xlu0 %1289
    %vm1291 = vcmp.eq.f32.partialorder %v1288, %v1290
    %v1292 = vsel %vm1291, %v1287, inf
    %1293 = vmin.xlane.f32.xlu0 %v1292
    %v1294 = vpop.xlane.xlu0 %1293
    %v1295 = vcvt.f32.s32 %v1294
    %v1296 = vcvt.f32.s32 %v1290
    %v1297 = vshll.u32 %v1296, 16
    %v1298 = vadd.s32 %v1297, %v1295
    %v1299 = vand.u32 %v650, 65535
    %v1300 = vshra.s32 %v650, 16
    %v1301 = vcvt.s32.f32 %v1299
    %v1302 = vcvt.s32.f32 %v1300
    %1303 = vmin.xlane.f32.xlu0 %v1302
    %v1304 = vpop.xlane.xlu0 %1303
    %vm1305 = vcmp.eq.f32.partialorder %v1302, %v1304
    %v1306 = vsel %vm1305, %v1301, inf
    %1307 = vmin.xlane.f32.xlu0 %v1306
    %v1308 = vpop.xlane.xlu0 %1307
    %v1309 = vcvt.f32.s32 %v1308
    %v1310 = vcvt.f32.s32 %v1304
    %v1311 = vshll.u32 %v1310, 16
    %v1312 = vadd.s32 %v1311, %v1309
    %v1313 = vand.u32 %v651, 65535
    %v1314 = vshra.s32 %v651, 16
    %v1315 = vcvt.s32.f32 %v1313
    %v1316 = vcvt.s32.f32 %v1314
    %1317 = vmin.xlane.f32.xlu0 %v1316
    %v1318 = vpop.xlane.xlu0 %1317
    %vm1319 = vcmp.eq.f32.partialorder %v1316, %v1318
    %v1320 = vsel %vm1319, %v1315, inf
    %1321 = vmin.xlane.f32.xlu0 %v1320
    %v1322 = vpop.xlane.xlu0 %1321
    %v1323 = vcvt.f32.s32 %v1322
    %v1324 = vcvt.f32.s32 %v1318
    %v1325 = vshll.u32 %v1324, 16
    %v1326 = vadd.s32 %v1325, %v1323
    %v1327 = vand.u32 %v652, 65535
    %v1328 = vshra.s32 %v652, 16
    %v1329 = vcvt.s32.f32 %v1327
    %v1330 = vcvt.s32.f32 %v1328
    %1331 = vmin.xlane.f32.xlu0 %v1330
    %v1332 = vpop.xlane.xlu0 %1331
    %vm1333 = vcmp.eq.f32.partialorder %v1330, %v1332
    %v1334 = vsel %vm1333, %v1329, inf
    %1335 = vmin.xlane.f32.xlu0 %v1334
    %v1336 = vpop.xlane.xlu0 %1335
    %v1337 = vcvt.f32.s32 %v1336
    %v1338 = vcvt.f32.s32 %v1332
    %v1339 = vshll.u32 %v1338, 16
    %v1340 = vadd.s32 %v1339, %v1337
    %v1341 = vand.u32 %v653, 65535
    %v1342 = vshra.s32 %v653, 16
    %v1343 = vcvt.s32.f32 %v1341
    %v1344 = vcvt.s32.f32 %v1342
    %1345 = vmin.xlane.f32.xlu0 %v1344
    %v1346 = vpop.xlane.xlu0 %1345
    %vm1347 = vcmp.eq.f32.partialorder %v1344, %v1346
    %v1348 = vsel %vm1347, %v1343, inf
    %1349 = vmin.xlane.f32.xlu0 %v1348
    %v1350 = vpop.xlane.xlu0 %1349
    %v1351 = vcvt.f32.s32 %v1350
    %v1352 = vcvt.f32.s32 %v1346
    %v1353 = vshll.u32 %v1352, 16
    %v1354 = vadd.s32 %v1353, %v1351
    %v1355 = vand.u32 %v654, 65535
    %v1356 = vshra.s32 %v654, 16
    %v1357 = vcvt.s32.f32 %v1355
    %v1358 = vcvt.s32.f32 %v1356
    %1359 = vmin.xlane.f32.xlu0 %v1358
    %v1360 = vpop.xlane.xlu0 %1359
    %vm1361 = vcmp.eq.f32.partialorder %v1358, %v1360
    %v1362 = vsel %vm1361, %v1357, inf
    %1363 = vmin.xlane.f32.xlu0 %v1362
    %v1364 = vpop.xlane.xlu0 %1363
    %v1365 = vcvt.f32.s32 %v1364
    %v1366 = vcvt.f32.s32 %v1360
    %v1367 = vshll.u32 %v1366, 16
    %v1368 = vadd.s32 %v1367, %v1365
    %v1369 = vand.u32 %v655, 65535
    %v1370 = vshra.s32 %v655, 16
    %v1371 = vcvt.s32.f32 %v1369
    %v1372 = vcvt.s32.f32 %v1370
    %1373 = vmin.xlane.f32.xlu0 %v1372
    %v1374 = vpop.xlane.xlu0 %1373
    %vm1375 = vcmp.eq.f32.partialorder %v1372, %v1374
    %v1376 = vsel %vm1375, %v1371, inf
    %1377 = vmin.xlane.f32.xlu0 %v1376
    %v1378 = vpop.xlane.xlu0 %1377
    %v1379 = vcvt.f32.s32 %v1378
    %v1380 = vcvt.f32.s32 %v1374
    %v1381 = vshll.u32 %v1380, 16
    %v1382 = vadd.s32 %v1381, %v1379
    %v1383 = vand.u32 %v656, 65535
    %v1384 = vshra.s32 %v656, 16
    %v1385 = vcvt.s32.f32 %v1383
    %v1386 = vcvt.s32.f32 %v1384
    %1387 = vmin.xlane.f32.xlu0 %v1386
    %v1388 = vpop.xlane.xlu0 %1387
    %vm1389 = vcmp.eq.f32.partialorder %v1386, %v1388
    %v1390 = vsel %vm1389, %v1385, inf
    %1391 = vmin.xlane.f32.xlu0 %v1390
    %v1392 = vpop.xlane.xlu0 %1391
    %v1393 = vcvt.f32.s32 %v1392
    %v1394 = vcvt.f32.s32 %v1388
    %v1395 = vshll.u32 %v1394, 16
    %v1396 = vadd.s32 %v1395, %v1393
    %v1397 = vand.u32 %v657, 65535
    %v1398 = vshra.s32 %v657, 16
    %v1399 = vcvt.s32.f32 %v1397
    %v1400 = vcvt.s32.f32 %v1398
    %1401 = vmin.xlane.f32.xlu0 %v1400
    %v1402 = vpop.xlane.xlu0 %1401
    %vm1403 = vcmp.eq.f32.partialorder %v1400, %v1402
    %v1404 = vsel %vm1403, %v1399, inf
    %1405 = vmin.xlane.f32.xlu0 %v1404
    %v1406 = vpop.xlane.xlu0 %1405
    %v1407 = vcvt.f32.s32 %v1406
    %v1408 = vcvt.f32.s32 %v1402
    %v1409 = vshll.u32 %v1408, 16
    %v1410 = vadd.s32 %v1409, %v1407
    %v1411 = vand.u32 %v658, 65535
    %v1412 = vshra.s32 %v658, 16
    %v1413 = vcvt.s32.f32 %v1411
    %v1414 = vcvt.s32.f32 %v1412
    %1415 = vmin.xlane.f32.xlu0 %v1414
    %v1416 = vpop.xlane.xlu0 %1415
    %vm1417 = vcmp.eq.f32.partialorder %v1414, %v1416
    %v1418 = vsel %vm1417, %v1413, inf
    %1419 = vmin.xlane.f32.xlu0 %v1418
    %v1420 = vpop.xlane.xlu0 %1419
    %v1421 = vcvt.f32.s32 %v1420
    %v1422 = vcvt.f32.s32 %v1416
    %v1423 = vshll.u32 %v1422, 16
    %v1424 = vadd.s32 %v1423, %v1421
    %v1425 = vand.u32 %v659, 65535
    %v1426 = vshra.s32 %v659, 16
    %v1427 = vcvt.s32.f32 %v1425
    %v1428 = vcvt.s32.f32 %v1426
    %1429 = vmin.xlane.f32.xlu0 %v1428
    %v1430 = vpop.xlane.xlu0 %1429
    %vm1431 = vcmp.eq.f32.partialorder %v1428, %v1430
    %v1432 = vsel %vm1431, %v1427, inf
    %1433 = vmin.xlane.f32.xlu0 %v1432
    %v1434 = vpop.xlane.xlu0 %1433
    %v1435 = vcvt.f32.s32 %v1434
    %v1436 = vcvt.f32.s32 %v1430
    %v1437 = vshll.u32 %v1436, 16
    %v1438 = vadd.s32 %v1437, %v1435
    %v1439 = vand.u32 %v660, 65535
    %v1440 = vshra.s32 %v660, 16
    %v1441 = vcvt.s32.f32 %v1439
    %v1442 = vcvt.s32.f32 %v1440
    %1443 = vmin.xlane.f32.xlu0 %v1442
    %v1444 = vpop.xlane.xlu0 %1443
    %vm1445 = vcmp.eq.f32.partialorder %v1442, %v1444
    %v1446 = vsel %vm1445, %v1441, inf
    %1447 = vmin.xlane.f32.xlu0 %v1446
    %v1448 = vpop.xlane.xlu0 %1447
    %v1449 = vcvt.f32.s32 %v1448
    %v1450 = vcvt.f32.s32 %v1444
    %v1451 = vshll.u32 %v1450, 16
    %v1452 = vadd.s32 %v1451, %v1449
    %v1453 = vand.u32 %v661, 65535
    %v1454 = vshra.s32 %v661, 16
    %v1455 = vcvt.s32.f32 %v1453
    %v1456 = vcvt.s32.f32 %v1454
    %1457 = vmin.xlane.f32.xlu0 %v1456
    %v1458 = vpop.xlane.xlu0 %1457
    %vm1459 = vcmp.eq.f32.partialorder %v1456, %v1458
    %v1460 = vsel %vm1459, %v1455, inf
    %1461 = vmin.xlane.f32.xlu0 %v1460
    %v1462 = vpop.xlane.xlu0 %1461
    %v1463 = vcvt.f32.s32 %v1462
    %v1464 = vcvt.f32.s32 %v1458
    %v1465 = vshll.u32 %v1464, 16
    %v1466 = vadd.s32 %v1465, %v1463
    %v1467 = vand.u32 %v662, 65535
    %v1468 = vshra.s32 %v662, 16
    %v1469 = vcvt.s32.f32 %v1467
    %v1470 = vcvt.s32.f32 %v1468
    %1471 = vmin.xlane.f32.xlu0 %v1470
    %v1472 = vpop.xlane.xlu0 %1471
    %vm1473 = vcmp.eq.f32.partialorder %v1470, %v1472
    %v1474 = vsel %vm1473, %v1469, inf
    %1475 = vmin.xlane.f32.xlu0 %v1474
    %v1476 = vpop.xlane.xlu0 %1475
    %v1477 = vcvt.f32.s32 %v1476
    %v1478 = vcvt.f32.s32 %v1472
    %v1479 = vshll.u32 %v1478, 16
    %v1480 = vadd.s32 %v1479, %v1477
    %v1481 = vand.u32 %v663, 65535
    %v1482 = vshra.s32 %v663, 16
    %v1483 = vcvt.s32.f32 %v1481
    %v1484 = vcvt.s32.f32 %v1482
    %1485 = vmin.xlane.f32.xlu0 %v1484
    %v1486 = vpop.xlane.xlu0 %1485
    %vm1487 = vcmp.eq.f32.partialorder %v1484, %v1486
    %v1488 = vsel %vm1487, %v1483, inf
    %1489 = vmin.xlane.f32.xlu0 %v1488
    %v1490 = vpop.xlane.xlu0 %1489
    %v1491 = vcvt.f32.s32 %v1490
    %v1492 = vcvt.f32.s32 %v1486
    %v1493 = vshll.u32 %v1492, 16
    %v1494 = vadd.s32 %v1493, %v1491
    %v1495 = vand.u32 %v664, 65535
    %v1496 = vshra.s32 %v664, 16
    %v1497 = vcvt.s32.f32 %v1495
    %v1498 = vcvt.s32.f32 %v1496
    %1499 = vmin.xlane.f32.xlu0 %v1498
    %v1500 = vpop.xlane.xlu0 %1499
    %vm1501 = vcmp.eq.f32.partialorder %v1498, %v1500
    %v1502 = vsel %vm1501, %v1497, inf
    %1503 = vmin.xlane.f32.xlu0 %v1502
    %v1504 = vpop.xlane.xlu0 %1503
    %v1505 = vcvt.f32.s32 %v1504
    %v1506 = vcvt.f32.s32 %v1500
    %v1507 = vshll.u32 %v1506, 16
    %v1508 = vadd.s32 %v1507, %v1505
    %v1509 = vand.u32 %v665, 65535
    %v1510 = vshra.s32 %v665, 16
    %v1511 = vcvt.s32.f32 %v1509
    %v1512 = vcvt.s32.f32 %v1510
    %1513 = vmin.xlane.f32.xlu0 %v1512
    %v1514 = vpop.xlane.xlu0 %1513
    %vm1515 = vcmp.eq.f32.partialorder %v1512, %v1514
    %v1516 = vsel %vm1515, %v1511, inf
    %1517 = vmin.xlane.f32.xlu0 %v1516
    %v1518 = vpop.xlane.xlu0 %1517
    %v1519 = vcvt.f32.s32 %v1518
    %v1520 = vcvt.f32.s32 %v1514
    %v1521 = vshll.u32 %v1520, 16
    %v1522 = vadd.s32 %v1521, %v1519
    %v1523 = vand.u32 %v666, 65535
    %v1524 = vshra.s32 %v666, 16
    %v1525 = vcvt.s32.f32 %v1523
    %v1526 = vcvt.s32.f32 %v1524
    %1527 = vmin.xlane.f32.xlu0 %v1526
    %v1528 = vpop.xlane.xlu0 %1527
    %vm1529 = vcmp.eq.f32.partialorder %v1526, %v1528
    %v1530 = vsel %vm1529, %v1525, inf
    %1531 = vmin.xlane.f32.xlu0 %v1530
    %v1532 = vpop.xlane.xlu0 %1531
    %v1533 = vcvt.f32.s32 %v1532
    %v1534 = vcvt.f32.s32 %v1528
    %v1535 = vshll.u32 %v1534, 16
    %v1536 = vadd.s32 %v1535, %v1533
    %v1537 = vand.u32 %v667, 65535
    %v1538 = vshra.s32 %v667, 16
    %v1539 = vcvt.s32.f32 %v1537
    %v1540 = vcvt.s32.f32 %v1538
    %1541 = vmin.xlane.f32.xlu0 %v1540
    %v1542 = vpop.xlane.xlu0 %1541
    %vm1543 = vcmp.eq.f32.partialorder %v1540, %v1542
    %v1544 = vsel %vm1543, %v1539, inf
    %1545 = vmin.xlane.f32.xlu0 %v1544
    %v1546 = vpop.xlane.xlu0 %1545
    %v1547 = vcvt.f32.s32 %v1546
    %v1548 = vcvt.f32.s32 %v1542
    %v1549 = vshll.u32 %v1548, 16
    %v1550 = vadd.s32 %v1549, %v1547
    %v1551 = vand.u32 %v668, 65535
    %v1552 = vshra.s32 %v668, 16
    %v1553 = vcvt.s32.f32 %v1551
    %v1554 = vcvt.s32.f32 %v1552
    %1555 = vmin.xlane.f32.xlu0 %v1554
    %v1556 = vpop.xlane.xlu0 %1555
    %vm1557 = vcmp.eq.f32.partialorder %v1554, %v1556
    %v1558 = vsel %vm1557, %v1553, inf
    %1559 = vmin.xlane.f32.xlu0 %v1558
    %v1560 = vpop.xlane.xlu0 %1559
    %v1561 = vcvt.f32.s32 %v1560
    %v1562 = vcvt.f32.s32 %v1556
    %v1563 = vshll.u32 %v1562, 16
    %v1564 = vadd.s32 %v1563, %v1561
    %vm1565 = vcmp.eq.s32.totalorder %v43, %v682
    %vm1566 = vcmp.eq.s32.totalorder %v43, %v696
    %vm1567 = vcmp.eq.s32.totalorder %v43, %v710
    %vm1568 = vcmp.eq.s32.totalorder %v43, %v724
    %vm1569 = vcmp.eq.s32.totalorder %v43, %v738
    %vm1570 = vcmp.eq.s32.totalorder %v43, %v752
    %vm1571 = vcmp.eq.s32.totalorder %v43, %v766
    %vm1572 = vcmp.eq.s32.totalorder %v43, %v780
    %vm1573 = vcmp.eq.s32.totalorder %v43, %v794
    %vm1574 = vcmp.eq.s32.totalorder %v43, %v808
    %vm1575 = vcmp.eq.s32.totalorder %v43, %v822
    %vm1576 = vcmp.eq.s32.totalorder %v43, %v836
    %vm1577 = vcmp.eq.s32.totalorder %v43, %v850
    %vm1578 = vcmp.eq.s32.totalorder %v43, %v864
    %vm1579 = vcmp.eq.s32.totalorder %v43, %v878
    %vm1580 = vcmp.eq.s32.totalorder %v43, %v892
    %vm1581 = vcmp.eq.s32.totalorder %v43, %v906
    %vm1582 = vcmp.eq.s32.totalorder %v43, %v920
    %vm1583 = vcmp.eq.s32.totalorder %v43, %v934
    %vm1584 = vcmp.eq.s32.totalorder %v43, %v948
    %vm1585 = vcmp.eq.s32.totalorder %v43, %v962
    %vm1586 = vcmp.eq.s32.totalorder %v43, %v976
    %vm1587 = vcmp.eq.s32.totalorder %v43, %v990
    %vm1588 = vcmp.eq.s32.totalorder %v43, %v1004
    %vm1589 = vcmp.eq.s32.totalorder %v43, %v1018
    %vm1590 = vcmp.eq.s32.totalorder %v43, %v1032
    %vm1591 = vcmp.eq.s32.totalorder %v43, %v1046
    %vm1592 = vcmp.eq.s32.totalorder %v43, %v1060
    %vm1593 = vcmp.eq.s32.totalorder %v43, %v1074
    %vm1594 = vcmp.eq.s32.totalorder %v43, %v1088
    %vm1595 = vcmp.eq.s32.totalorder %v43, %v1102
    %vm1596 = vcmp.eq.s32.totalorder %v43, %v1116
    %vm1597 = vcmp.eq.s32.totalorder %v43, %v1130
    %vm1598 = vcmp.eq.s32.totalorder %v43, %v1144
    %vm1599 = vcmp.eq.s32.totalorder %v43, %v1158
    %vm1600 = vcmp.eq.s32.totalorder %v43, %v1172
    %vm1601 = vcmp.eq.s32.totalorder %v43, %v1186
    %vm1602 = vcmp.eq.s32.totalorder %v43, %v1200
    %vm1603 = vcmp.eq.s32.totalorder %v43, %v1214
    %vm1604 = vcmp.eq.s32.totalorder %v43, %v1228
    %vm1605 = vcmp.eq.s32.totalorder %v43, %v1242
    %vm1606 = vcmp.eq.s32.totalorder %v43, %v1256
    %vm1607 = vcmp.eq.s32.totalorder %v43, %v1270
    %vm1608 = vcmp.eq.s32.totalorder %v43, %v1284
    %vm1609 = vcmp.eq.s32.totalorder %v43, %v1298
    %vm1610 = vcmp.eq.s32.totalorder %v43, %v1312
    %vm1611 = vcmp.eq.s32.totalorder %v43, %v1326
    %vm1612 = vcmp.eq.s32.totalorder %v43, %v1340
    %vm1613 = vcmp.eq.s32.totalorder %v43, %v1354
    %vm1614 = vcmp.eq.s32.totalorder %v43, %v1368
    %vm1615 = vcmp.eq.s32.totalorder %v43, %v1382
    %vm1616 = vcmp.eq.s32.totalorder %v43, %v1396
    %vm1617 = vcmp.eq.s32.totalorder %v43, %v1410
    %vm1618 = vcmp.eq.s32.totalorder %v43, %v1424
    %vm1619 = vcmp.eq.s32.totalorder %v43, %v1438
    %vm1620 = vcmp.eq.s32.totalorder %v43, %v1452
    %vm1621 = vcmp.eq.s32.totalorder %v43, %v1466
    %vm1622 = vcmp.eq.s32.totalorder %v43, %v1480
    %vm1623 = vcmp.eq.s32.totalorder %v43, %v1494
    %vm1624 = vcmp.eq.s32.totalorder %v43, %v1508
    %vm1625 = vcmp.eq.s32.totalorder %v43, %v1522
    %vm1626 = vcmp.eq.s32.totalorder %v43, %v1536
    %vm1627 = vcmp.eq.s32.totalorder %v43, %v1550
    %vm1628 = vcmp.eq.s32.totalorder %v43, %v1564
    %v1629 = vsel %vm1565, -1e+30, %v349
    %v1630 = vsel %vm1566, -1e+30, %v350
    %v1631 = vsel %vm1567, -1e+30, %v351
    %v1632 = vsel %vm1568, -1e+30, %v352
    %v1633 = vsel %vm1569, -1e+30, %v353
    %v1634 = vsel %vm1570, -1e+30, %v354
    %v1635 = vsel %vm1571, -1e+30, %v355
    %v1636 = vsel %vm1572, -1e+30, %v356
    %v1637 = vsel %vm1573, -1e+30, %v357
    %v1638 = vsel %vm1574, -1e+30, %v358
    %v1639 = vsel %vm1575, -1e+30, %v359
    %v1640 = vsel %vm1576, -1e+30, %v360
    %v1641 = vsel %vm1577, -1e+30, %v361
    %v1642 = vsel %vm1578, -1e+30, %v362
    %v1643 = vsel %vm1579, -1e+30, %v363
    %v1644 = vsel %vm1580, -1e+30, %v364
    %v1645 = vsel %vm1581, -1e+30, %v365
    %v1646 = vsel %vm1582, -1e+30, %v366
    %v1647 = vsel %vm1583, -1e+30, %v367
    %v1648 = vsel %vm1584, -1e+30, %v368
    %v1649 = vsel %vm1585, -1e+30, %v369
    %v1650 = vsel %vm1586, -1e+30, %v370
    %v1651 = vsel %vm1587, -1e+30, %v371
    %v1652 = vsel %vm1588, -1e+30, %v372
    %v1653 = vsel %vm1589, -1e+30, %v373
    %v1654 = vsel %vm1590, -1e+30, %v374
    %v1655 = vsel %vm1591, -1e+30, %v375
    %v1656 = vsel %vm1592, -1e+30, %v376
    %v1657 = vsel %vm1593, -1e+30, %v377
    %v1658 = vsel %vm1594, -1e+30, %v378
    %v1659 = vsel %vm1595, -1e+30, %v379
    %v1660 = vsel %vm1596, -1e+30, %v380
    %v1661 = vsel %vm1597, -1e+30, %v381
    %v1662 = vsel %vm1598, -1e+30, %v382
    %v1663 = vsel %vm1599, -1e+30, %v383
    %v1664 = vsel %vm1600, -1e+30, %v384
    %v1665 = vsel %vm1601, -1e+30, %v385
    %v1666 = vsel %vm1602, -1e+30, %v386
    %v1667 = vsel %vm1603, -1e+30, %v387
    %v1668 = vsel %vm1604, -1e+30, %v388
    %v1669 = vsel %vm1605, -1e+30, %v389
    %v1670 = vsel %vm1606, -1e+30, %v390
    %v1671 = vsel %vm1607, -1e+30, %v391
    %v1672 = vsel %vm1608, -1e+30, %v392
    %v1673 = vsel %vm1609, -1e+30, %v393
    %v1674 = vsel %vm1610, -1e+30, %v394
    %v1675 = vsel %vm1611, -1e+30, %v395
    %v1676 = vsel %vm1612, -1e+30, %v396
    %v1677 = vsel %vm1613, -1e+30, %v397
    %v1678 = vsel %vm1614, -1e+30, %v398
    %v1679 = vsel %vm1615, -1e+30, %v399
    %v1680 = vsel %vm1616, -1e+30, %v400
    %v1681 = vsel %vm1617, -1e+30, %v401
    %v1682 = vsel %vm1618, -1e+30, %v402
    %v1683 = vsel %vm1619, -1e+30, %v403
    %v1684 = vsel %vm1620, -1e+30, %v404
    %v1685 = vsel %vm1621, -1e+30, %v405
    %v1686 = vsel %vm1622, -1e+30, %v406
    %v1687 = vsel %vm1623, -1e+30, %v407
    %v1688 = vsel %vm1624, -1e+30, %v408
    %v1689 = vsel %vm1625, -1e+30, %v409
    %v1690 = vsel %vm1626, -1e+30, %v410
    %v1691 = vsel %vm1627, -1e+30, %v411
    %v1692 = vsel %vm1628, -1e+30, %v412
    %1693 = vmax.xlane.f32.xlu0 %v1629
    %v1694 = vpop.xlane.xlu0 %1693
    %1695 = vmax.xlane.f32.xlu0 %v1630
    %v1696 = vpop.xlane.xlu0 %1695
    %1697 = vmax.xlane.f32.xlu0 %v1631
    %v1698 = vpop.xlane.xlu0 %1697
    %1699 = vmax.xlane.f32.xlu0 %v1632
    %v1700 = vpop.xlane.xlu0 %1699
    %1701 = vmax.xlane.f32.xlu0 %v1633
    %v1702 = vpop.xlane.xlu0 %1701
    %1703 = vmax.xlane.f32.xlu0 %v1634
    %v1704 = vpop.xlane.xlu0 %1703
    %1705 = vmax.xlane.f32.xlu0 %v1635
    %v1706 = vpop.xlane.xlu0 %1705
    %1707 = vmax.xlane.f32.xlu0 %v1636
    %v1708 = vpop.xlane.xlu0 %1707
    %1709 = vmax.xlane.f32.xlu0 %v1637
    %v1710 = vpop.xlane.xlu0 %1709
    %1711 = vmax.xlane.f32.xlu0 %v1638
    %v1712 = vpop.xlane.xlu0 %1711
    %1713 = vmax.xlane.f32.xlu0 %v1639
    %v1714 = vpop.xlane.xlu0 %1713
    %1715 = vmax.xlane.f32.xlu0 %v1640
    %v1716 = vpop.xlane.xlu0 %1715
    %1717 = vmax.xlane.f32.xlu0 %v1641
    %v1718 = vpop.xlane.xlu0 %1717
    %1719 = vmax.xlane.f32.xlu0 %v1642
    %v1720 = vpop.xlane.xlu0 %1719
    %1721 = vmax.xlane.f32.xlu0 %v1643
    %v1722 = vpop.xlane.xlu0 %1721
    %1723 = vmax.xlane.f32.xlu0 %v1644
    %v1724 = vpop.xlane.xlu0 %1723
    %1725 = vmax.xlane.f32.xlu0 %v1645
    %v1726 = vpop.xlane.xlu0 %1725
    %1727 = vmax.xlane.f32.xlu0 %v1646
    %v1728 = vpop.xlane.xlu0 %1727
    %1729 = vmax.xlane.f32.xlu0 %v1647
    %v1730 = vpop.xlane.xlu0 %1729
    %1731 = vmax.xlane.f32.xlu0 %v1648
    %v1732 = vpop.xlane.xlu0 %1731
    %1733 = vmax.xlane.f32.xlu0 %v1649
    %v1734 = vpop.xlane.xlu0 %1733
    %1735 = vmax.xlane.f32.xlu0 %v1650
    %v1736 = vpop.xlane.xlu0 %1735
    %1737 = vmax.xlane.f32.xlu0 %v1651
    %v1738 = vpop.xlane.xlu0 %1737
    %1739 = vmax.xlane.f32.xlu0 %v1652
    %v1740 = vpop.xlane.xlu0 %1739
    %1741 = vmax.xlane.f32.xlu0 %v1653
    %v1742 = vpop.xlane.xlu0 %1741
    %1743 = vmax.xlane.f32.xlu0 %v1654
    %v1744 = vpop.xlane.xlu0 %1743
    %1745 = vmax.xlane.f32.xlu0 %v1655
    %v1746 = vpop.xlane.xlu0 %1745
    %1747 = vmax.xlane.f32.xlu0 %v1656
    %v1748 = vpop.xlane.xlu0 %1747
    %1749 = vmax.xlane.f32.xlu0 %v1657
    %v1750 = vpop.xlane.xlu0 %1749
    %1751 = vmax.xlane.f32.xlu0 %v1658
    %v1752 = vpop.xlane.xlu0 %1751
    %1753 = vmax.xlane.f32.xlu0 %v1659
    %v1754 = vpop.xlane.xlu0 %1753
    %1755 = vmax.xlane.f32.xlu0 %v1660
    %v1756 = vpop.xlane.xlu0 %1755
    %1757 = vmax.xlane.f32.xlu0 %v1661
    %v1758 = vpop.xlane.xlu0 %1757
    %1759 = vmax.xlane.f32.xlu0 %v1662
    %v1760 = vpop.xlane.xlu0 %1759
    %1761 = vmax.xlane.f32.xlu0 %v1663
    %v1762 = vpop.xlane.xlu0 %1761
    %1763 = vmax.xlane.f32.xlu0 %v1664
    %v1764 = vpop.xlane.xlu0 %1763
    %1765 = vmax.xlane.f32.xlu0 %v1665
    %v1766 = vpop.xlane.xlu0 %1765
    %1767 = vmax.xlane.f32.xlu0 %v1666
    %v1768 = vpop.xlane.xlu0 %1767
    %1769 = vmax.xlane.f32.xlu0 %v1667
    %v1770 = vpop.xlane.xlu0 %1769
    %1771 = vmax.xlane.f32.xlu0 %v1668
    %v1772 = vpop.xlane.xlu0 %1771
    %1773 = vmax.xlane.f32.xlu0 %v1669
    %v1774 = vpop.xlane.xlu0 %1773
    %1775 = vmax.xlane.f32.xlu0 %v1670
    %v1776 = vpop.xlane.xlu0 %1775
    %1777 = vmax.xlane.f32.xlu0 %v1671
    %v1778 = vpop.xlane.xlu0 %1777
    %1779 = vmax.xlane.f32.xlu0 %v1672
    %v1780 = vpop.xlane.xlu0 %1779
    %1781 = vmax.xlane.f32.xlu0 %v1673
    %v1782 = vpop.xlane.xlu0 %1781
    %1783 = vmax.xlane.f32.xlu0 %v1674
    %v1784 = vpop.xlane.xlu0 %1783
    %1785 = vmax.xlane.f32.xlu0 %v1675
    %v1786 = vpop.xlane.xlu0 %1785
    %1787 = vmax.xlane.f32.xlu0 %v1676
    %v1788 = vpop.xlane.xlu0 %1787
    %1789 = vmax.xlane.f32.xlu0 %v1677
    %v1790 = vpop.xlane.xlu0 %1789
    %1791 = vmax.xlane.f32.xlu0 %v1678
    %v1792 = vpop.xlane.xlu0 %1791
    %1793 = vmax.xlane.f32.xlu0 %v1679
    %v1794 = vpop.xlane.xlu0 %1793
    %1795 = vmax.xlane.f32.xlu0 %v1680
    %v1796 = vpop.xlane.xlu0 %1795
    %1797 = vmax.xlane.f32.xlu0 %v1681
    %v1798 = vpop.xlane.xlu0 %1797
    %1799 = vmax.xlane.f32.xlu0 %v1682
    %v1800 = vpop.xlane.xlu0 %1799
    %1801 = vmax.xlane.f32.xlu0 %v1683
    %v1802 = vpop.xlane.xlu0 %1801
    %1803 = vmax.xlane.f32.xlu0 %v1684
    %v1804 = vpop.xlane.xlu0 %1803
    %1805 = vmax.xlane.f32.xlu0 %v1685
    %v1806 = vpop.xlane.xlu0 %1805
    %1807 = vmax.xlane.f32.xlu0 %v1686
    %v1808 = vpop.xlane.xlu0 %1807
    %1809 = vmax.xlane.f32.xlu0 %v1687
    %v1810 = vpop.xlane.xlu0 %1809
    %1811 = vmax.xlane.f32.xlu0 %v1688
    %v1812 = vpop.xlane.xlu0 %1811
    %1813 = vmax.xlane.f32.xlu0 %v1689
    %v1814 = vpop.xlane.xlu0 %1813
    %1815 = vmax.xlane.f32.xlu0 %v1690
    %v1816 = vpop.xlane.xlu0 %1815
    %1817 = vmax.xlane.f32.xlu0 %v1691
    %v1818 = vpop.xlane.xlu0 %1817
    %1819 = vmax.xlane.f32.xlu0 %v1692
    %v1820 = vpop.xlane.xlu0 %1819
    %vm1821 = vcmp.eq.f32.partialorder %v1629, %v1694
    %vm1822 = vcmp.eq.f32.partialorder %v1630, %v1696
    %vm1823 = vcmp.eq.f32.partialorder %v1631, %v1698
    %vm1824 = vcmp.eq.f32.partialorder %v1632, %v1700
    %vm1825 = vcmp.eq.f32.partialorder %v1633, %v1702
    %vm1826 = vcmp.eq.f32.partialorder %v1634, %v1704
    %vm1827 = vcmp.eq.f32.partialorder %v1635, %v1706
    %vm1828 = vcmp.eq.f32.partialorder %v1636, %v1708
    %vm1829 = vcmp.eq.f32.partialorder %v1637, %v1710
    %vm1830 = vcmp.eq.f32.partialorder %v1638, %v1712
    %vm1831 = vcmp.eq.f32.partialorder %v1639, %v1714
    %vm1832 = vcmp.eq.f32.partialorder %v1640, %v1716
    %vm1833 = vcmp.eq.f32.partialorder %v1641, %v1718
    %vm1834 = vcmp.eq.f32.partialorder %v1642, %v1720
    %vm1835 = vcmp.eq.f32.partialorder %v1643, %v1722
    %vm1836 = vcmp.eq.f32.partialorder %v1644, %v1724
    %vm1837 = vcmp.eq.f32.partialorder %v1645, %v1726
    %vm1838 = vcmp.eq.f32.partialorder %v1646, %v1728
    %vm1839 = vcmp.eq.f32.partialorder %v1647, %v1730
    %vm1840 = vcmp.eq.f32.partialorder %v1648, %v1732
    %vm1841 = vcmp.eq.f32.partialorder %v1649, %v1734
    %vm1842 = vcmp.eq.f32.partialorder %v1650, %v1736
    %vm1843 = vcmp.eq.f32.partialorder %v1651, %v1738
    %vm1844 = vcmp.eq.f32.partialorder %v1652, %v1740
    %vm1845 = vcmp.eq.f32.partialorder %v1653, %v1742
    %vm1846 = vcmp.eq.f32.partialorder %v1654, %v1744
    %vm1847 = vcmp.eq.f32.partialorder %v1655, %v1746
    %vm1848 = vcmp.eq.f32.partialorder %v1656, %v1748
    %vm1849 = vcmp.eq.f32.partialorder %v1657, %v1750
    %vm1850 = vcmp.eq.f32.partialorder %v1658, %v1752
    %vm1851 = vcmp.eq.f32.partialorder %v1659, %v1754
    %vm1852 = vcmp.eq.f32.partialorder %v1660, %v1756
    %vm1853 = vcmp.eq.f32.partialorder %v1661, %v1758
    %vm1854 = vcmp.eq.f32.partialorder %v1662, %v1760
    %vm1855 = vcmp.eq.f32.partialorder %v1663, %v1762
    %vm1856 = vcmp.eq.f32.partialorder %v1664, %v1764
    %vm1857 = vcmp.eq.f32.partialorder %v1665, %v1766
    %vm1858 = vcmp.eq.f32.partialorder %v1666, %v1768
    %vm1859 = vcmp.eq.f32.partialorder %v1667, %v1770
    %vm1860 = vcmp.eq.f32.partialorder %v1668, %v1772
    %vm1861 = vcmp.eq.f32.partialorder %v1669, %v1774
    %vm1862 = vcmp.eq.f32.partialorder %v1670, %v1776
    %vm1863 = vcmp.eq.f32.partialorder %v1671, %v1778
    %vm1864 = vcmp.eq.f32.partialorder %v1672, %v1780
    %vm1865 = vcmp.eq.f32.partialorder %v1673, %v1782
    %vm1866 = vcmp.eq.f32.partialorder %v1674, %v1784
    %vm1867 = vcmp.eq.f32.partialorder %v1675, %v1786
    %vm1868 = vcmp.eq.f32.partialorder %v1676, %v1788
    %vm1869 = vcmp.eq.f32.partialorder %v1677, %v1790
    %vm1870 = vcmp.eq.f32.partialorder %v1678, %v1792
    %vm1871 = vcmp.eq.f32.partialorder %v1679, %v1794
    %vm1872 = vcmp.eq.f32.partialorder %v1680, %v1796
    %vm1873 = vcmp.eq.f32.partialorder %v1681, %v1798
    %vm1874 = vcmp.eq.f32.partialorder %v1682, %v1800
    %vm1875 = vcmp.eq.f32.partialorder %v1683, %v1802
    %vm1876 = vcmp.eq.f32.partialorder %v1684, %v1804
    %vm1877 = vcmp.eq.f32.partialorder %v1685, %v1806
    %vm1878 = vcmp.eq.f32.partialorder %v1686, %v1808
    %vm1879 = vcmp.eq.f32.partialorder %v1687, %v1810
    %vm1880 = vcmp.eq.f32.partialorder %v1688, %v1812
    %vm1881 = vcmp.eq.f32.partialorder %v1689, %v1814
    %vm1882 = vcmp.eq.f32.partialorder %v1690, %v1816
    %vm1883 = vcmp.eq.f32.partialorder %v1691, %v1818
    %vm1884 = vcmp.eq.f32.partialorder %v1692, %v1820
    %v1885 = vsel %vm1821, %v43, 128
    %v1886 = vsel %vm1822, %v43, 128
    %v1887 = vsel %vm1823, %v43, 128
    %v1888 = vsel %vm1824, %v43, 128
    %v1889 = vsel %vm1825, %v43, 128
    %v1890 = vsel %vm1826, %v43, 128
    %v1891 = vsel %vm1827, %v43, 128
    %v1892 = vsel %vm1828, %v43, 128
    %v1893 = vsel %vm1829, %v43, 128
    %v1894 = vsel %vm1830, %v43, 128
    %v1895 = vsel %vm1831, %v43, 128
    %v1896 = vsel %vm1832, %v43, 128
    %v1897 = vsel %vm1833, %v43, 128
    %v1898 = vsel %vm1834, %v43, 128
    %v1899 = vsel %vm1835, %v43, 128
    %v1900 = vsel %vm1836, %v43, 128
    %v1901 = vsel %vm1837, %v43, 128
    %v1902 = vsel %vm1838, %v43, 128
    %v1903 = vsel %vm1839, %v43, 128
    %v1904 = vsel %vm1840, %v43, 128
    %v1905 = vsel %vm1841, %v43, 128
    %v1906 = vsel %vm1842, %v43, 128
    %v1907 = vsel %vm1843, %v43, 128
    %v1908 = vsel %vm1844, %v43, 128
    %v1909 = vsel %vm1845, %v43, 128
    %v1910 = vsel %vm1846, %v43, 128
    %v1911 = vsel %vm1847, %v43, 128
    %v1912 = vsel %vm1848, %v43, 128
    %v1913 = vsel %vm1849, %v43, 128
    %v1914 = vsel %vm1850, %v43, 128
    %v1915 = vsel %vm1851, %v43, 128
    %v1916 = vsel %vm1852, %v43, 128
    %v1917 = vsel %vm1853, %v43, 128
    %v1918 = vsel %vm1854, %v43, 128
    %v1919 = vsel %vm1855, %v43, 128
    %v1920 = vsel %vm1856, %v43, 128
    %v1921 = vsel %vm1857, %v43, 128
    %v1922 = vsel %vm1858, %v43, 128
    %v1923 = vsel %vm1859, %v43, 128
    %v1924 = vsel %vm1860, %v43, 128
    %v1925 = vsel %vm1861, %v43, 128
    %v1926 = vsel %vm1862, %v43, 128
    %v1927 = vsel %vm1863, %v43, 128
    %v1928 = vsel %vm1864, %v43, 128
    %v1929 = vsel %vm1865, %v43, 128
    %v1930 = vsel %vm1866, %v43, 128
    %v1931 = vsel %vm1867, %v43, 128
    %v1932 = vsel %vm1868, %v43, 128
    %v1933 = vsel %vm1869, %v43, 128
    %v1934 = vsel %vm1870, %v43, 128
    %v1935 = vsel %vm1871, %v43, 128
    %v1936 = vsel %vm1872, %v43, 128
    %v1937 = vsel %vm1873, %v43, 128
    %v1938 = vsel %vm1874, %v43, 128
    %v1939 = vsel %vm1875, %v43, 128
    %v1940 = vsel %vm1876, %v43, 128
    %v1941 = vsel %vm1877, %v43, 128
    %v1942 = vsel %vm1878, %v43, 128
    %v1943 = vsel %vm1879, %v43, 128
    %v1944 = vsel %vm1880, %v43, 128
    %v1945 = vsel %vm1881, %v43, 128
    %v1946 = vsel %vm1882, %v43, 128
    %v1947 = vsel %vm1883, %v43, 128
    %v1948 = vsel %vm1884, %v43, 128
    %v1949 = vand.u32 %v1885, 65535
    %v1950 = vshra.s32 %v1885, 16
    %v1951 = vcvt.s32.f32 %v1949
    %v1952 = vcvt.s32.f32 %v1950
    %1953 = vmin.xlane.f32.xlu0 %v1952
    %v1954 = vpop.xlane.xlu0 %1953
    %vm1955 = vcmp.eq.f32.partialorder %v1952, %v1954
    %v1956 = vsel %vm1955, %v1951, inf
    %1957 = vmin.xlane.f32.xlu0 %v1956
    %v1958 = vpop.xlane.xlu0 %1957
    %v1959 = vcvt.f32.s32 %v1958
    %v1960 = vcvt.f32.s32 %v1954
    %v1961 = vshll.u32 %v1960, 16
    %v1962 = vadd.s32 %v1961, %v1959
    %v1963 = vand.u32 %v1886, 65535
    %v1964 = vshra.s32 %v1886, 16
    %v1965 = vcvt.s32.f32 %v1963
    %v1966 = vcvt.s32.f32 %v1964
    %1967 = vmin.xlane.f32.xlu0 %v1966
    %v1968 = vpop.xlane.xlu0 %1967
    %vm1969 = vcmp.eq.f32.partialorder %v1966, %v1968
    %v1970 = vsel %vm1969, %v1965, inf
    %1971 = vmin.xlane.f32.xlu0 %v1970
    %v1972 = vpop.xlane.xlu0 %1971
    %v1973 = vcvt.f32.s32 %v1972
    %v1974 = vcvt.f32.s32 %v1968
    %v1975 = vshll.u32 %v1974, 16
    %v1976 = vadd.s32 %v1975, %v1973
    %v1977 = vand.u32 %v1887, 65535
    %v1978 = vshra.s32 %v1887, 16
    %v1979 = vcvt.s32.f32 %v1977
    %v1980 = vcvt.s32.f32 %v1978
    %1981 = vmin.xlane.f32.xlu0 %v1980
    %v1982 = vpop.xlane.xlu0 %1981
    %vm1983 = vcmp.eq.f32.partialorder %v1980, %v1982
    %v1984 = vsel %vm1983, %v1979, inf
    %1985 = vmin.xlane.f32.xlu0 %v1984
    %v1986 = vpop.xlane.xlu0 %1985
    %v1987 = vcvt.f32.s32 %v1986
    %v1988 = vcvt.f32.s32 %v1982
    %v1989 = vshll.u32 %v1988, 16
    %v1990 = vadd.s32 %v1989, %v1987
    %v1991 = vand.u32 %v1888, 65535
    %v1992 = vshra.s32 %v1888, 16
    %v1993 = vcvt.s32.f32 %v1991
    %v1994 = vcvt.s32.f32 %v1992
    %1995 = vmin.xlane.f32.xlu0 %v1994
    %v1996 = vpop.xlane.xlu0 %1995
    %vm1997 = vcmp.eq.f32.partialorder %v1994, %v1996
    %v1998 = vsel %vm1997, %v1993, inf
    %1999 = vmin.xlane.f32.xlu0 %v1998
    %v2000 = vpop.xlane.xlu0 %1999
    %v2001 = vcvt.f32.s32 %v2000
    %v2002 = vcvt.f32.s32 %v1996
    %v2003 = vshll.u32 %v2002, 16
    %v2004 = vadd.s32 %v2003, %v2001
    %v2005 = vand.u32 %v1889, 65535
    %v2006 = vshra.s32 %v1889, 16
    %v2007 = vcvt.s32.f32 %v2005
    %v2008 = vcvt.s32.f32 %v2006
    %2009 = vmin.xlane.f32.xlu0 %v2008
    %v2010 = vpop.xlane.xlu0 %2009
    %vm2011 = vcmp.eq.f32.partialorder %v2008, %v2010
    %v2012 = vsel %vm2011, %v2007, inf
    %2013 = vmin.xlane.f32.xlu0 %v2012
    %v2014 = vpop.xlane.xlu0 %2013
    %v2015 = vcvt.f32.s32 %v2014
    %v2016 = vcvt.f32.s32 %v2010
    %v2017 = vshll.u32 %v2016, 16
    %v2018 = vadd.s32 %v2017, %v2015
    %v2019 = vand.u32 %v1890, 65535
    %v2020 = vshra.s32 %v1890, 16
    %v2021 = vcvt.s32.f32 %v2019
    %v2022 = vcvt.s32.f32 %v2020
    %2023 = vmin.xlane.f32.xlu0 %v2022
    %v2024 = vpop.xlane.xlu0 %2023
    %vm2025 = vcmp.eq.f32.partialorder %v2022, %v2024
    %v2026 = vsel %vm2025, %v2021, inf
    %2027 = vmin.xlane.f32.xlu0 %v2026
    %v2028 = vpop.xlane.xlu0 %2027
    %v2029 = vcvt.f32.s32 %v2028
    %v2030 = vcvt.f32.s32 %v2024
    %v2031 = vshll.u32 %v2030, 16
    %v2032 = vadd.s32 %v2031, %v2029
    %v2033 = vand.u32 %v1891, 65535
    %v2034 = vshra.s32 %v1891, 16
    %v2035 = vcvt.s32.f32 %v2033
    %v2036 = vcvt.s32.f32 %v2034
    %2037 = vmin.xlane.f32.xlu0 %v2036
    %v2038 = vpop.xlane.xlu0 %2037
    %vm2039 = vcmp.eq.f32.partialorder %v2036, %v2038
    %v2040 = vsel %vm2039, %v2035, inf
    %2041 = vmin.xlane.f32.xlu0 %v2040
    %v2042 = vpop.xlane.xlu0 %2041
    %v2043 = vcvt.f32.s32 %v2042
    %v2044 = vcvt.f32.s32 %v2038
    %v2045 = vshll.u32 %v2044, 16
    %v2046 = vadd.s32 %v2045, %v2043
    %v2047 = vand.u32 %v1892, 65535
    %v2048 = vshra.s32 %v1892, 16
    %v2049 = vcvt.s32.f32 %v2047
    %v2050 = vcvt.s32.f32 %v2048
    %2051 = vmin.xlane.f32.xlu0 %v2050
    %v2052 = vpop.xlane.xlu0 %2051
    %vm2053 = vcmp.eq.f32.partialorder %v2050, %v2052
    %v2054 = vsel %vm2053, %v2049, inf
    %2055 = vmin.xlane.f32.xlu0 %v2054
    %v2056 = vpop.xlane.xlu0 %2055
    %v2057 = vcvt.f32.s32 %v2056
    %v2058 = vcvt.f32.s32 %v2052
    %v2059 = vshll.u32 %v2058, 16
    %v2060 = vadd.s32 %v2059, %v2057
    %v2061 = vand.u32 %v1893, 65535
    %v2062 = vshra.s32 %v1893, 16
    %v2063 = vcvt.s32.f32 %v2061
    %v2064 = vcvt.s32.f32 %v2062
    %2065 = vmin.xlane.f32.xlu0 %v2064
    %v2066 = vpop.xlane.xlu0 %2065
    %vm2067 = vcmp.eq.f32.partialorder %v2064, %v2066
    %v2068 = vsel %vm2067, %v2063, inf
    %2069 = vmin.xlane.f32.xlu0 %v2068
    %v2070 = vpop.xlane.xlu0 %2069
    %v2071 = vcvt.f32.s32 %v2070
    %v2072 = vcvt.f32.s32 %v2066
    %v2073 = vshll.u32 %v2072, 16
    %v2074 = vadd.s32 %v2073, %v2071
    %v2075 = vand.u32 %v1894, 65535
    %v2076 = vshra.s32 %v1894, 16
    %v2077 = vcvt.s32.f32 %v2075
    %v2078 = vcvt.s32.f32 %v2076
    %2079 = vmin.xlane.f32.xlu0 %v2078
    %v2080 = vpop.xlane.xlu0 %2079
    %vm2081 = vcmp.eq.f32.partialorder %v2078, %v2080
    %v2082 = vsel %vm2081, %v2077, inf
    %2083 = vmin.xlane.f32.xlu0 %v2082
    %v2084 = vpop.xlane.xlu0 %2083
    %v2085 = vcvt.f32.s32 %v2084
    %v2086 = vcvt.f32.s32 %v2080
    %v2087 = vshll.u32 %v2086, 16
    %v2088 = vadd.s32 %v2087, %v2085
    %v2089 = vand.u32 %v1895, 65535
    %v2090 = vshra.s32 %v1895, 16
    %v2091 = vcvt.s32.f32 %v2089
    %v2092 = vcvt.s32.f32 %v2090
    %2093 = vmin.xlane.f32.xlu0 %v2092
    %v2094 = vpop.xlane.xlu0 %2093
    %vm2095 = vcmp.eq.f32.partialorder %v2092, %v2094
    %v2096 = vsel %vm2095, %v2091, inf
    %2097 = vmin.xlane.f32.xlu0 %v2096
    %v2098 = vpop.xlane.xlu0 %2097
    %v2099 = vcvt.f32.s32 %v2098
    %v2100 = vcvt.f32.s32 %v2094
    %v2101 = vshll.u32 %v2100, 16
    %v2102 = vadd.s32 %v2101, %v2099
    %v2103 = vand.u32 %v1896, 65535
    %v2104 = vshra.s32 %v1896, 16
    %v2105 = vcvt.s32.f32 %v2103
    %v2106 = vcvt.s32.f32 %v2104
    %2107 = vmin.xlane.f32.xlu0 %v2106
    %v2108 = vpop.xlane.xlu0 %2107
    %vm2109 = vcmp.eq.f32.partialorder %v2106, %v2108
    %v2110 = vsel %vm2109, %v2105, inf
    %2111 = vmin.xlane.f32.xlu0 %v2110
    %v2112 = vpop.xlane.xlu0 %2111
    %v2113 = vcvt.f32.s32 %v2112
    %v2114 = vcvt.f32.s32 %v2108
    %v2115 = vshll.u32 %v2114, 16
    %v2116 = vadd.s32 %v2115, %v2113
    %v2117 = vand.u32 %v1897, 65535
    %v2118 = vshra.s32 %v1897, 16
    %v2119 = vcvt.s32.f32 %v2117
    %v2120 = vcvt.s32.f32 %v2118
    %2121 = vmin.xlane.f32.xlu0 %v2120
    %v2122 = vpop.xlane.xlu0 %2121
    %vm2123 = vcmp.eq.f32.partialorder %v2120, %v2122
    %v2124 = vsel %vm2123, %v2119, inf
    %2125 = vmin.xlane.f32.xlu0 %v2124
    %v2126 = vpop.xlane.xlu0 %2125
    %v2127 = vcvt.f32.s32 %v2126
    %v2128 = vcvt.f32.s32 %v2122
    %v2129 = vshll.u32 %v2128, 16
    %v2130 = vadd.s32 %v2129, %v2127
    %v2131 = vand.u32 %v1898, 65535
    %v2132 = vshra.s32 %v1898, 16
    %v2133 = vcvt.s32.f32 %v2131
    %v2134 = vcvt.s32.f32 %v2132
    %2135 = vmin.xlane.f32.xlu0 %v2134
    %v2136 = vpop.xlane.xlu0 %2135
    %vm2137 = vcmp.eq.f32.partialorder %v2134, %v2136
    %v2138 = vsel %vm2137, %v2133, inf
    %2139 = vmin.xlane.f32.xlu0 %v2138
    %v2140 = vpop.xlane.xlu0 %2139
    %v2141 = vcvt.f32.s32 %v2140
    %v2142 = vcvt.f32.s32 %v2136
    %v2143 = vshll.u32 %v2142, 16
    %v2144 = vadd.s32 %v2143, %v2141
    %v2145 = vand.u32 %v1899, 65535
    %v2146 = vshra.s32 %v1899, 16
    %v2147 = vcvt.s32.f32 %v2145
    %v2148 = vcvt.s32.f32 %v2146
    %2149 = vmin.xlane.f32.xlu0 %v2148
    %v2150 = vpop.xlane.xlu0 %2149
    %vm2151 = vcmp.eq.f32.partialorder %v2148, %v2150
    %v2152 = vsel %vm2151, %v2147, inf
    %2153 = vmin.xlane.f32.xlu0 %v2152
    %v2154 = vpop.xlane.xlu0 %2153
    %v2155 = vcvt.f32.s32 %v2154
    %v2156 = vcvt.f32.s32 %v2150
    %v2157 = vshll.u32 %v2156, 16
    %v2158 = vadd.s32 %v2157, %v2155
    %v2159 = vand.u32 %v1900, 65535
    %v2160 = vshra.s32 %v1900, 16
    %v2161 = vcvt.s32.f32 %v2159
    %v2162 = vcvt.s32.f32 %v2160
    %2163 = vmin.xlane.f32.xlu0 %v2162
    %v2164 = vpop.xlane.xlu0 %2163
    %vm2165 = vcmp.eq.f32.partialorder %v2162, %v2164
    %v2166 = vsel %vm2165, %v2161, inf
    %2167 = vmin.xlane.f32.xlu0 %v2166
    %v2168 = vpop.xlane.xlu0 %2167
    %v2169 = vcvt.f32.s32 %v2168
    %v2170 = vcvt.f32.s32 %v2164
    %v2171 = vshll.u32 %v2170, 16
    %v2172 = vadd.s32 %v2171, %v2169
    %v2173 = vand.u32 %v1901, 65535
    %v2174 = vshra.s32 %v1901, 16
    %v2175 = vcvt.s32.f32 %v2173
    %v2176 = vcvt.s32.f32 %v2174
    %2177 = vmin.xlane.f32.xlu0 %v2176
    %v2178 = vpop.xlane.xlu0 %2177
    %vm2179 = vcmp.eq.f32.partialorder %v2176, %v2178
    %v2180 = vsel %vm2179, %v2175, inf
    %2181 = vmin.xlane.f32.xlu0 %v2180
    %v2182 = vpop.xlane.xlu0 %2181
    %v2183 = vcvt.f32.s32 %v2182
    %v2184 = vcvt.f32.s32 %v2178
    %v2185 = vshll.u32 %v2184, 16
    %v2186 = vadd.s32 %v2185, %v2183
    %v2187 = vand.u32 %v1902, 65535
    %v2188 = vshra.s32 %v1902, 16
    %v2189 = vcvt.s32.f32 %v2187
    %v2190 = vcvt.s32.f32 %v2188
    %2191 = vmin.xlane.f32.xlu0 %v2190
    %v2192 = vpop.xlane.xlu0 %2191
    %vm2193 = vcmp.eq.f32.partialorder %v2190, %v2192
    %v2194 = vsel %vm2193, %v2189, inf
    %2195 = vmin.xlane.f32.xlu0 %v2194
    %v2196 = vpop.xlane.xlu0 %2195
    %v2197 = vcvt.f32.s32 %v2196
    %v2198 = vcvt.f32.s32 %v2192
    %v2199 = vshll.u32 %v2198, 16
    %v2200 = vadd.s32 %v2199, %v2197
    %v2201 = vand.u32 %v1903, 65535
    %v2202 = vshra.s32 %v1903, 16
    %v2203 = vcvt.s32.f32 %v2201
    %v2204 = vcvt.s32.f32 %v2202
    %2205 = vmin.xlane.f32.xlu0 %v2204
    %v2206 = vpop.xlane.xlu0 %2205
    %vm2207 = vcmp.eq.f32.partialorder %v2204, %v2206
    %v2208 = vsel %vm2207, %v2203, inf
    %2209 = vmin.xlane.f32.xlu0 %v2208
    %v2210 = vpop.xlane.xlu0 %2209
    %v2211 = vcvt.f32.s32 %v2210
    %v2212 = vcvt.f32.s32 %v2206
    %v2213 = vshll.u32 %v2212, 16
    %v2214 = vadd.s32 %v2213, %v2211
    %v2215 = vand.u32 %v1904, 65535
    %v2216 = vshra.s32 %v1904, 16
    %v2217 = vcvt.s32.f32 %v2215
    %v2218 = vcvt.s32.f32 %v2216
    %2219 = vmin.xlane.f32.xlu0 %v2218
    %v2220 = vpop.xlane.xlu0 %2219
    %vm2221 = vcmp.eq.f32.partialorder %v2218, %v2220
    %v2222 = vsel %vm2221, %v2217, inf
    %2223 = vmin.xlane.f32.xlu0 %v2222
    %v2224 = vpop.xlane.xlu0 %2223
    %v2225 = vcvt.f32.s32 %v2224
    %v2226 = vcvt.f32.s32 %v2220
    %v2227 = vshll.u32 %v2226, 16
    %v2228 = vadd.s32 %v2227, %v2225
    %v2229 = vand.u32 %v1905, 65535
    %v2230 = vshra.s32 %v1905, 16
    %v2231 = vcvt.s32.f32 %v2229
    %v2232 = vcvt.s32.f32 %v2230
    %2233 = vmin.xlane.f32.xlu0 %v2232
    %v2234 = vpop.xlane.xlu0 %2233
    %vm2235 = vcmp.eq.f32.partialorder %v2232, %v2234
    %v2236 = vsel %vm2235, %v2231, inf
    %2237 = vmin.xlane.f32.xlu0 %v2236
    %v2238 = vpop.xlane.xlu0 %2237
    %v2239 = vcvt.f32.s32 %v2238
    %v2240 = vcvt.f32.s32 %v2234
    %v2241 = vshll.u32 %v2240, 16
    %v2242 = vadd.s32 %v2241, %v2239
    %v2243 = vand.u32 %v1906, 65535
    %v2244 = vshra.s32 %v1906, 16
    %v2245 = vcvt.s32.f32 %v2243
    %v2246 = vcvt.s32.f32 %v2244
    %2247 = vmin.xlane.f32.xlu0 %v2246
    %v2248 = vpop.xlane.xlu0 %2247
    %vm2249 = vcmp.eq.f32.partialorder %v2246, %v2248
    %v2250 = vsel %vm2249, %v2245, inf
    %2251 = vmin.xlane.f32.xlu0 %v2250
    %v2252 = vpop.xlane.xlu0 %2251
    %v2253 = vcvt.f32.s32 %v2252
    %v2254 = vcvt.f32.s32 %v2248
    %v2255 = vshll.u32 %v2254, 16
    %v2256 = vadd.s32 %v2255, %v2253
    %v2257 = vand.u32 %v1907, 65535
    %v2258 = vshra.s32 %v1907, 16
    %v2259 = vcvt.s32.f32 %v2257
    %v2260 = vcvt.s32.f32 %v2258
    %2261 = vmin.xlane.f32.xlu0 %v2260
    %v2262 = vpop.xlane.xlu0 %2261
    %vm2263 = vcmp.eq.f32.partialorder %v2260, %v2262
    %v2264 = vsel %vm2263, %v2259, inf
    %2265 = vmin.xlane.f32.xlu0 %v2264
    %v2266 = vpop.xlane.xlu0 %2265
    %v2267 = vcvt.f32.s32 %v2266
    %v2268 = vcvt.f32.s32 %v2262
    %v2269 = vshll.u32 %v2268, 16
    %v2270 = vadd.s32 %v2269, %v2267
    %v2271 = vand.u32 %v1908, 65535
    %v2272 = vshra.s32 %v1908, 16
    %v2273 = vcvt.s32.f32 %v2271
    %v2274 = vcvt.s32.f32 %v2272
    %2275 = vmin.xlane.f32.xlu0 %v2274
    %v2276 = vpop.xlane.xlu0 %2275
    %vm2277 = vcmp.eq.f32.partialorder %v2274, %v2276
    %v2278 = vsel %vm2277, %v2273, inf
    %2279 = vmin.xlane.f32.xlu0 %v2278
    %v2280 = vpop.xlane.xlu0 %2279
    %v2281 = vcvt.f32.s32 %v2280
    %v2282 = vcvt.f32.s32 %v2276
    %v2283 = vshll.u32 %v2282, 16
    %v2284 = vadd.s32 %v2283, %v2281
    %v2285 = vand.u32 %v1909, 65535
    %v2286 = vshra.s32 %v1909, 16
    %v2287 = vcvt.s32.f32 %v2285
    %v2288 = vcvt.s32.f32 %v2286
    %2289 = vmin.xlane.f32.xlu0 %v2288
    %v2290 = vpop.xlane.xlu0 %2289
    %vm2291 = vcmp.eq.f32.partialorder %v2288, %v2290
    %v2292 = vsel %vm2291, %v2287, inf
    %2293 = vmin.xlane.f32.xlu0 %v2292
    %v2294 = vpop.xlane.xlu0 %2293
    %v2295 = vcvt.f32.s32 %v2294
    %v2296 = vcvt.f32.s32 %v2290
    %v2297 = vshll.u32 %v2296, 16
    %v2298 = vadd.s32 %v2297, %v2295
    %v2299 = vand.u32 %v1910, 65535
    %v2300 = vshra.s32 %v1910, 16
    %v2301 = vcvt.s32.f32 %v2299
    %v2302 = vcvt.s32.f32 %v2300
    %2303 = vmin.xlane.f32.xlu0 %v2302
    %v2304 = vpop.xlane.xlu0 %2303
    %vm2305 = vcmp.eq.f32.partialorder %v2302, %v2304
    %v2306 = vsel %vm2305, %v2301, inf
    %2307 = vmin.xlane.f32.xlu0 %v2306
    %v2308 = vpop.xlane.xlu0 %2307
    %v2309 = vcvt.f32.s32 %v2308
    %v2310 = vcvt.f32.s32 %v2304
    %v2311 = vshll.u32 %v2310, 16
    %v2312 = vadd.s32 %v2311, %v2309
    %v2313 = vand.u32 %v1911, 65535
    %v2314 = vshra.s32 %v1911, 16
    %v2315 = vcvt.s32.f32 %v2313
    %v2316 = vcvt.s32.f32 %v2314
    %2317 = vmin.xlane.f32.xlu0 %v2316
    %v2318 = vpop.xlane.xlu0 %2317
    %vm2319 = vcmp.eq.f32.partialorder %v2316, %v2318
    %v2320 = vsel %vm2319, %v2315, inf
    %2321 = vmin.xlane.f32.xlu0 %v2320
    %v2322 = vpop.xlane.xlu0 %2321
    %v2323 = vcvt.f32.s32 %v2322
    %v2324 = vcvt.f32.s32 %v2318
    %v2325 = vshll.u32 %v2324, 16
    %v2326 = vadd.s32 %v2325, %v2323
    %v2327 = vand.u32 %v1912, 65535
    %v2328 = vshra.s32 %v1912, 16
    %v2329 = vcvt.s32.f32 %v2327
    %v2330 = vcvt.s32.f32 %v2328
    %2331 = vmin.xlane.f32.xlu0 %v2330
    %v2332 = vpop.xlane.xlu0 %2331
    %vm2333 = vcmp.eq.f32.partialorder %v2330, %v2332
    %v2334 = vsel %vm2333, %v2329, inf
    %2335 = vmin.xlane.f32.xlu0 %v2334
    %v2336 = vpop.xlane.xlu0 %2335
    %v2337 = vcvt.f32.s32 %v2336
    %v2338 = vcvt.f32.s32 %v2332
    %v2339 = vshll.u32 %v2338, 16
    %v2340 = vadd.s32 %v2339, %v2337
    %v2341 = vand.u32 %v1913, 65535
    %v2342 = vshra.s32 %v1913, 16
    %v2343 = vcvt.s32.f32 %v2341
    %v2344 = vcvt.s32.f32 %v2342
    %2345 = vmin.xlane.f32.xlu0 %v2344
    %v2346 = vpop.xlane.xlu0 %2345
    %vm2347 = vcmp.eq.f32.partialorder %v2344, %v2346
    %v2348 = vsel %vm2347, %v2343, inf
    %2349 = vmin.xlane.f32.xlu0 %v2348
    %v2350 = vpop.xlane.xlu0 %2349
    %v2351 = vcvt.f32.s32 %v2350
    %v2352 = vcvt.f32.s32 %v2346
    %v2353 = vshll.u32 %v2352, 16
    %v2354 = vadd.s32 %v2353, %v2351
    %v2355 = vand.u32 %v1914, 65535
    %v2356 = vshra.s32 %v1914, 16
    %v2357 = vcvt.s32.f32 %v2355
    %v2358 = vcvt.s32.f32 %v2356
    %2359 = vmin.xlane.f32.xlu0 %v2358
    %v2360 = vpop.xlane.xlu0 %2359
    %vm2361 = vcmp.eq.f32.partialorder %v2358, %v2360
    %v2362 = vsel %vm2361, %v2357, inf
    %2363 = vmin.xlane.f32.xlu0 %v2362
    %v2364 = vpop.xlane.xlu0 %2363
    %v2365 = vcvt.f32.s32 %v2364
    %v2366 = vcvt.f32.s32 %v2360
    %v2367 = vshll.u32 %v2366, 16
    %v2368 = vadd.s32 %v2367, %v2365
    %v2369 = vand.u32 %v1915, 65535
    %v2370 = vshra.s32 %v1915, 16
    %v2371 = vcvt.s32.f32 %v2369
    %v2372 = vcvt.s32.f32 %v2370
    %2373 = vmin.xlane.f32.xlu0 %v2372
    %v2374 = vpop.xlane.xlu0 %2373
    %vm2375 = vcmp.eq.f32.partialorder %v2372, %v2374
    %v2376 = vsel %vm2375, %v2371, inf
    %2377 = vmin.xlane.f32.xlu0 %v2376
    %v2378 = vpop.xlane.xlu0 %2377
    %v2379 = vcvt.f32.s32 %v2378
    %v2380 = vcvt.f32.s32 %v2374
    %v2381 = vshll.u32 %v2380, 16
    %v2382 = vadd.s32 %v2381, %v2379
    %v2383 = vand.u32 %v1916, 65535
    %v2384 = vshra.s32 %v1916, 16
    %v2385 = vcvt.s32.f32 %v2383
    %v2386 = vcvt.s32.f32 %v2384
    %2387 = vmin.xlane.f32.xlu0 %v2386
    %v2388 = vpop.xlane.xlu0 %2387
    %vm2389 = vcmp.eq.f32.partialorder %v2386, %v2388
    %v2390 = vsel %vm2389, %v2385, inf
    %2391 = vmin.xlane.f32.xlu0 %v2390
    %v2392 = vpop.xlane.xlu0 %2391
    %v2393 = vcvt.f32.s32 %v2392
    %v2394 = vcvt.f32.s32 %v2388
    %v2395 = vshll.u32 %v2394, 16
    %v2396 = vadd.s32 %v2395, %v2393
    %v2397 = vand.u32 %v1917, 65535
    %v2398 = vshra.s32 %v1917, 16
    %v2399 = vcvt.s32.f32 %v2397
    %v2400 = vcvt.s32.f32 %v2398
    %2401 = vmin.xlane.f32.xlu0 %v2400
    %v2402 = vpop.xlane.xlu0 %2401
    %vm2403 = vcmp.eq.f32.partialorder %v2400, %v2402
    %v2404 = vsel %vm2403, %v2399, inf
    %2405 = vmin.xlane.f32.xlu0 %v2404
    %v2406 = vpop.xlane.xlu0 %2405
    %v2407 = vcvt.f32.s32 %v2406
    %v2408 = vcvt.f32.s32 %v2402
    %v2409 = vshll.u32 %v2408, 16
    %v2410 = vadd.s32 %v2409, %v2407
    %v2411 = vand.u32 %v1918, 65535
    %v2412 = vshra.s32 %v1918, 16
    %v2413 = vcvt.s32.f32 %v2411
    %v2414 = vcvt.s32.f32 %v2412
    %2415 = vmin.xlane.f32.xlu0 %v2414
    %v2416 = vpop.xlane.xlu0 %2415
    %vm2417 = vcmp.eq.f32.partialorder %v2414, %v2416
    %v2418 = vsel %vm2417, %v2413, inf
    %2419 = vmin.xlane.f32.xlu0 %v2418
    %v2420 = vpop.xlane.xlu0 %2419
    %v2421 = vcvt.f32.s32 %v2420
    %v2422 = vcvt.f32.s32 %v2416
    %v2423 = vshll.u32 %v2422, 16
    %v2424 = vadd.s32 %v2423, %v2421
    %v2425 = vand.u32 %v1919, 65535
    %v2426 = vshra.s32 %v1919, 16
    %v2427 = vcvt.s32.f32 %v2425
    %v2428 = vcvt.s32.f32 %v2426
    %2429 = vmin.xlane.f32.xlu0 %v2428
    %v2430 = vpop.xlane.xlu0 %2429
    %vm2431 = vcmp.eq.f32.partialorder %v2428, %v2430
    %v2432 = vsel %vm2431, %v2427, inf
    %2433 = vmin.xlane.f32.xlu0 %v2432
    %v2434 = vpop.xlane.xlu0 %2433
    %v2435 = vcvt.f32.s32 %v2434
    %v2436 = vcvt.f32.s32 %v2430
    %v2437 = vshll.u32 %v2436, 16
    %v2438 = vadd.s32 %v2437, %v2435
    %v2439 = vand.u32 %v1920, 65535
    %v2440 = vshra.s32 %v1920, 16
    %v2441 = vcvt.s32.f32 %v2439
    %v2442 = vcvt.s32.f32 %v2440
    %2443 = vmin.xlane.f32.xlu0 %v2442
    %v2444 = vpop.xlane.xlu0 %2443
    %vm2445 = vcmp.eq.f32.partialorder %v2442, %v2444
    %v2446 = vsel %vm2445, %v2441, inf
    %2447 = vmin.xlane.f32.xlu0 %v2446
    %v2448 = vpop.xlane.xlu0 %2447
    %v2449 = vcvt.f32.s32 %v2448
    %v2450 = vcvt.f32.s32 %v2444
    %v2451 = vshll.u32 %v2450, 16
    %v2452 = vadd.s32 %v2451, %v2449
    %v2453 = vand.u32 %v1921, 65535
    %v2454 = vshra.s32 %v1921, 16
    %v2455 = vcvt.s32.f32 %v2453
    %v2456 = vcvt.s32.f32 %v2454
    %2457 = vmin.xlane.f32.xlu0 %v2456
    %v2458 = vpop.xlane.xlu0 %2457
    %vm2459 = vcmp.eq.f32.partialorder %v2456, %v2458
    %v2460 = vsel %vm2459, %v2455, inf
    %2461 = vmin.xlane.f32.xlu0 %v2460
    %v2462 = vpop.xlane.xlu0 %2461
    %v2463 = vcvt.f32.s32 %v2462
    %v2464 = vcvt.f32.s32 %v2458
    %v2465 = vshll.u32 %v2464, 16
    %v2466 = vadd.s32 %v2465, %v2463
    %v2467 = vand.u32 %v1922, 65535
    %v2468 = vshra.s32 %v1922, 16
    %v2469 = vcvt.s32.f32 %v2467
    %v2470 = vcvt.s32.f32 %v2468
    %2471 = vmin.xlane.f32.xlu0 %v2470
    %v2472 = vpop.xlane.xlu0 %2471
    %vm2473 = vcmp.eq.f32.partialorder %v2470, %v2472
    %v2474 = vsel %vm2473, %v2469, inf
    %2475 = vmin.xlane.f32.xlu0 %v2474
    %v2476 = vpop.xlane.xlu0 %2475
    %v2477 = vcvt.f32.s32 %v2476
    %v2478 = vcvt.f32.s32 %v2472
    %v2479 = vshll.u32 %v2478, 16
    %v2480 = vadd.s32 %v2479, %v2477
    %v2481 = vand.u32 %v1923, 65535
    %v2482 = vshra.s32 %v1923, 16
    %v2483 = vcvt.s32.f32 %v2481
    %v2484 = vcvt.s32.f32 %v2482
    %2485 = vmin.xlane.f32.xlu0 %v2484
    %v2486 = vpop.xlane.xlu0 %2485
    %vm2487 = vcmp.eq.f32.partialorder %v2484, %v2486
    %v2488 = vsel %vm2487, %v2483, inf
    %2489 = vmin.xlane.f32.xlu0 %v2488
    %v2490 = vpop.xlane.xlu0 %2489
    %v2491 = vcvt.f32.s32 %v2490
    %v2492 = vcvt.f32.s32 %v2486
    %v2493 = vshll.u32 %v2492, 16
    %v2494 = vadd.s32 %v2493, %v2491
    %v2495 = vand.u32 %v1924, 65535
    %v2496 = vshra.s32 %v1924, 16
    %v2497 = vcvt.s32.f32 %v2495
    %v2498 = vcvt.s32.f32 %v2496
    %2499 = vmin.xlane.f32.xlu0 %v2498
    %v2500 = vpop.xlane.xlu0 %2499
    %vm2501 = vcmp.eq.f32.partialorder %v2498, %v2500
    %v2502 = vsel %vm2501, %v2497, inf
    %2503 = vmin.xlane.f32.xlu0 %v2502
    %v2504 = vpop.xlane.xlu0 %2503
    %v2505 = vcvt.f32.s32 %v2504
    %v2506 = vcvt.f32.s32 %v2500
    %v2507 = vshll.u32 %v2506, 16
    %v2508 = vadd.s32 %v2507, %v2505
    %v2509 = vand.u32 %v1925, 65535
    %v2510 = vshra.s32 %v1925, 16
    %v2511 = vcvt.s32.f32 %v2509
    %v2512 = vcvt.s32.f32 %v2510
    %2513 = vmin.xlane.f32.xlu0 %v2512
    %v2514 = vpop.xlane.xlu0 %2513
    %vm2515 = vcmp.eq.f32.partialorder %v2512, %v2514
    %v2516 = vsel %vm2515, %v2511, inf
    %2517 = vmin.xlane.f32.xlu0 %v2516
    %v2518 = vpop.xlane.xlu0 %2517
    %v2519 = vcvt.f32.s32 %v2518
    %v2520 = vcvt.f32.s32 %v2514
    %v2521 = vshll.u32 %v2520, 16
    %v2522 = vadd.s32 %v2521, %v2519
    %v2523 = vand.u32 %v1926, 65535
    %v2524 = vshra.s32 %v1926, 16
    %v2525 = vcvt.s32.f32 %v2523
    %v2526 = vcvt.s32.f32 %v2524
    %2527 = vmin.xlane.f32.xlu0 %v2526
    %v2528 = vpop.xlane.xlu0 %2527
    %vm2529 = vcmp.eq.f32.partialorder %v2526, %v2528
    %v2530 = vsel %vm2529, %v2525, inf
    %2531 = vmin.xlane.f32.xlu0 %v2530
    %v2532 = vpop.xlane.xlu0 %2531
    %v2533 = vcvt.f32.s32 %v2532
    %v2534 = vcvt.f32.s32 %v2528
    %v2535 = vshll.u32 %v2534, 16
    %v2536 = vadd.s32 %v2535, %v2533
    %v2537 = vand.u32 %v1927, 65535
    %v2538 = vshra.s32 %v1927, 16
    %v2539 = vcvt.s32.f32 %v2537
    %v2540 = vcvt.s32.f32 %v2538
    %2541 = vmin.xlane.f32.xlu0 %v2540
    %v2542 = vpop.xlane.xlu0 %2541
    %vm2543 = vcmp.eq.f32.partialorder %v2540, %v2542
    %v2544 = vsel %vm2543, %v2539, inf
    %2545 = vmin.xlane.f32.xlu0 %v2544
    %v2546 = vpop.xlane.xlu0 %2545
    %v2547 = vcvt.f32.s32 %v2546
    %v2548 = vcvt.f32.s32 %v2542
    %v2549 = vshll.u32 %v2548, 16
    %v2550 = vadd.s32 %v2549, %v2547
    %v2551 = vand.u32 %v1928, 65535
    %v2552 = vshra.s32 %v1928, 16
    %v2553 = vcvt.s32.f32 %v2551
    %v2554 = vcvt.s32.f32 %v2552
    %2555 = vmin.xlane.f32.xlu0 %v2554
    %v2556 = vpop.xlane.xlu0 %2555
    %vm2557 = vcmp.eq.f32.partialorder %v2554, %v2556
    %v2558 = vsel %vm2557, %v2553, inf
    %2559 = vmin.xlane.f32.xlu0 %v2558
    %v2560 = vpop.xlane.xlu0 %2559
    %v2561 = vcvt.f32.s32 %v2560
    %v2562 = vcvt.f32.s32 %v2556
    %v2563 = vshll.u32 %v2562, 16
    %v2564 = vadd.s32 %v2563, %v2561
    %v2565 = vand.u32 %v1929, 65535
    %v2566 = vshra.s32 %v1929, 16
    %v2567 = vcvt.s32.f32 %v2565
    %v2568 = vcvt.s32.f32 %v2566
    %2569 = vmin.xlane.f32.xlu0 %v2568
    %v2570 = vpop.xlane.xlu0 %2569
    %vm2571 = vcmp.eq.f32.partialorder %v2568, %v2570
    %v2572 = vsel %vm2571, %v2567, inf
    %2573 = vmin.xlane.f32.xlu0 %v2572
    %v2574 = vpop.xlane.xlu0 %2573
    %v2575 = vcvt.f32.s32 %v2574
    %v2576 = vcvt.f32.s32 %v2570
    %v2577 = vshll.u32 %v2576, 16
    %v2578 = vadd.s32 %v2577, %v2575
    %v2579 = vand.u32 %v1930, 65535
    %v2580 = vshra.s32 %v1930, 16
    %v2581 = vcvt.s32.f32 %v2579
    %v2582 = vcvt.s32.f32 %v2580
    %2583 = vmin.xlane.f32.xlu0 %v2582
    %v2584 = vpop.xlane.xlu0 %2583
    %vm2585 = vcmp.eq.f32.partialorder %v2582, %v2584
    %v2586 = vsel %vm2585, %v2581, inf
    %2587 = vmin.xlane.f32.xlu0 %v2586
    %v2588 = vpop.xlane.xlu0 %2587
    %v2589 = vcvt.f32.s32 %v2588
    %v2590 = vcvt.f32.s32 %v2584
    %v2591 = vshll.u32 %v2590, 16
    %v2592 = vadd.s32 %v2591, %v2589
    %v2593 = vand.u32 %v1931, 65535
    %v2594 = vshra.s32 %v1931, 16
    %v2595 = vcvt.s32.f32 %v2593
    %v2596 = vcvt.s32.f32 %v2594
    %2597 = vmin.xlane.f32.xlu0 %v2596
    %v2598 = vpop.xlane.xlu0 %2597
    %vm2599 = vcmp.eq.f32.partialorder %v2596, %v2598
    %v2600 = vsel %vm2599, %v2595, inf
    %2601 = vmin.xlane.f32.xlu0 %v2600
    %v2602 = vpop.xlane.xlu0 %2601
    %v2603 = vcvt.f32.s32 %v2602
    %v2604 = vcvt.f32.s32 %v2598
    %v2605 = vshll.u32 %v2604, 16
    %v2606 = vadd.s32 %v2605, %v2603
    %v2607 = vand.u32 %v1932, 65535
    %v2608 = vshra.s32 %v1932, 16
    %v2609 = vcvt.s32.f32 %v2607
    %v2610 = vcvt.s32.f32 %v2608
    %2611 = vmin.xlane.f32.xlu0 %v2610
    %v2612 = vpop.xlane.xlu0 %2611
    %vm2613 = vcmp.eq.f32.partialorder %v2610, %v2612
    %v2614 = vsel %vm2613, %v2609, inf
    %2615 = vmin.xlane.f32.xlu0 %v2614
    %v2616 = vpop.xlane.xlu0 %2615
    %v2617 = vcvt.f32.s32 %v2616
    %v2618 = vcvt.f32.s32 %v2612
    %v2619 = vshll.u32 %v2618, 16
    %v2620 = vadd.s32 %v2619, %v2617
    %v2621 = vand.u32 %v1933, 65535
    %v2622 = vshra.s32 %v1933, 16
    %v2623 = vcvt.s32.f32 %v2621
    %v2624 = vcvt.s32.f32 %v2622
    %2625 = vmin.xlane.f32.xlu0 %v2624
    %v2626 = vpop.xlane.xlu0 %2625
    %vm2627 = vcmp.eq.f32.partialorder %v2624, %v2626
    %v2628 = vsel %vm2627, %v2623, inf
    %2629 = vmin.xlane.f32.xlu0 %v2628
    %v2630 = vpop.xlane.xlu0 %2629
    %v2631 = vcvt.f32.s32 %v2630
    %v2632 = vcvt.f32.s32 %v2626
    %v2633 = vshll.u32 %v2632, 16
    %v2634 = vadd.s32 %v2633, %v2631
    %v2635 = vand.u32 %v1934, 65535
    %v2636 = vshra.s32 %v1934, 16
    %v2637 = vcvt.s32.f32 %v2635
    %v2638 = vcvt.s32.f32 %v2636
    %2639 = vmin.xlane.f32.xlu0 %v2638
    %v2640 = vpop.xlane.xlu0 %2639
    %vm2641 = vcmp.eq.f32.partialorder %v2638, %v2640
    %v2642 = vsel %vm2641, %v2637, inf
    %2643 = vmin.xlane.f32.xlu0 %v2642
    %v2644 = vpop.xlane.xlu0 %2643
    %v2645 = vcvt.f32.s32 %v2644
    %v2646 = vcvt.f32.s32 %v2640
    %v2647 = vshll.u32 %v2646, 16
    %v2648 = vadd.s32 %v2647, %v2645
    %v2649 = vand.u32 %v1935, 65535
    %v2650 = vshra.s32 %v1935, 16
    %v2651 = vcvt.s32.f32 %v2649
    %v2652 = vcvt.s32.f32 %v2650
    %2653 = vmin.xlane.f32.xlu0 %v2652
    %v2654 = vpop.xlane.xlu0 %2653
    %vm2655 = vcmp.eq.f32.partialorder %v2652, %v2654
    %v2656 = vsel %vm2655, %v2651, inf
    %2657 = vmin.xlane.f32.xlu0 %v2656
    %v2658 = vpop.xlane.xlu0 %2657
    %v2659 = vcvt.f32.s32 %v2658
    %v2660 = vcvt.f32.s32 %v2654
    %v2661 = vshll.u32 %v2660, 16
    %v2662 = vadd.s32 %v2661, %v2659
    %v2663 = vand.u32 %v1936, 65535
    %v2664 = vshra.s32 %v1936, 16
    %v2665 = vcvt.s32.f32 %v2663
    %v2666 = vcvt.s32.f32 %v2664
    %2667 = vmin.xlane.f32.xlu0 %v2666
    %v2668 = vpop.xlane.xlu0 %2667
    %vm2669 = vcmp.eq.f32.partialorder %v2666, %v2668
    %v2670 = vsel %vm2669, %v2665, inf
    %2671 = vmin.xlane.f32.xlu0 %v2670
    %v2672 = vpop.xlane.xlu0 %2671
    %v2673 = vcvt.f32.s32 %v2672
    %v2674 = vcvt.f32.s32 %v2668
    %v2675 = vshll.u32 %v2674, 16
    %v2676 = vadd.s32 %v2675, %v2673
    %v2677 = vand.u32 %v1937, 65535
    %v2678 = vshra.s32 %v1937, 16
    %v2679 = vcvt.s32.f32 %v2677
    %v2680 = vcvt.s32.f32 %v2678
    %2681 = vmin.xlane.f32.xlu0 %v2680
    %v2682 = vpop.xlane.xlu0 %2681
    %vm2683 = vcmp.eq.f32.partialorder %v2680, %v2682
    %v2684 = vsel %vm2683, %v2679, inf
    %2685 = vmin.xlane.f32.xlu0 %v2684
    %v2686 = vpop.xlane.xlu0 %2685
    %v2687 = vcvt.f32.s32 %v2686
    %v2688 = vcvt.f32.s32 %v2682
    %v2689 = vshll.u32 %v2688, 16
    %v2690 = vadd.s32 %v2689, %v2687
    %v2691 = vand.u32 %v1938, 65535
    %v2692 = vshra.s32 %v1938, 16
    %v2693 = vcvt.s32.f32 %v2691
    %v2694 = vcvt.s32.f32 %v2692
    %2695 = vmin.xlane.f32.xlu0 %v2694
    %v2696 = vpop.xlane.xlu0 %2695
    %vm2697 = vcmp.eq.f32.partialorder %v2694, %v2696
    %v2698 = vsel %vm2697, %v2693, inf
    %2699 = vmin.xlane.f32.xlu0 %v2698
    %v2700 = vpop.xlane.xlu0 %2699
    %v2701 = vcvt.f32.s32 %v2700
    %v2702 = vcvt.f32.s32 %v2696
    %v2703 = vshll.u32 %v2702, 16
    %v2704 = vadd.s32 %v2703, %v2701
    %v2705 = vand.u32 %v1939, 65535
    %v2706 = vshra.s32 %v1939, 16
    %v2707 = vcvt.s32.f32 %v2705
    %v2708 = vcvt.s32.f32 %v2706
    %2709 = vmin.xlane.f32.xlu0 %v2708
    %v2710 = vpop.xlane.xlu0 %2709
    %vm2711 = vcmp.eq.f32.partialorder %v2708, %v2710
    %v2712 = vsel %vm2711, %v2707, inf
    %2713 = vmin.xlane.f32.xlu0 %v2712
    %v2714 = vpop.xlane.xlu0 %2713
    %v2715 = vcvt.f32.s32 %v2714
    %v2716 = vcvt.f32.s32 %v2710
    %v2717 = vshll.u32 %v2716, 16
    %v2718 = vadd.s32 %v2717, %v2715
    %v2719 = vand.u32 %v1940, 65535
    %v2720 = vshra.s32 %v1940, 16
    %v2721 = vcvt.s32.f32 %v2719
    %v2722 = vcvt.s32.f32 %v2720
    %2723 = vmin.xlane.f32.xlu0 %v2722
    %v2724 = vpop.xlane.xlu0 %2723
    %vm2725 = vcmp.eq.f32.partialorder %v2722, %v2724
    %v2726 = vsel %vm2725, %v2721, inf
    %2727 = vmin.xlane.f32.xlu0 %v2726
    %v2728 = vpop.xlane.xlu0 %2727
    %v2729 = vcvt.f32.s32 %v2728
    %v2730 = vcvt.f32.s32 %v2724
    %v2731 = vshll.u32 %v2730, 16
    %v2732 = vadd.s32 %v2731, %v2729
    %v2733 = vand.u32 %v1941, 65535
    %v2734 = vshra.s32 %v1941, 16
    %v2735 = vcvt.s32.f32 %v2733
    %v2736 = vcvt.s32.f32 %v2734
    %2737 = vmin.xlane.f32.xlu0 %v2736
    %v2738 = vpop.xlane.xlu0 %2737
    %vm2739 = vcmp.eq.f32.partialorder %v2736, %v2738
    %v2740 = vsel %vm2739, %v2735, inf
    %2741 = vmin.xlane.f32.xlu0 %v2740
    %v2742 = vpop.xlane.xlu0 %2741
    %v2743 = vcvt.f32.s32 %v2742
    %v2744 = vcvt.f32.s32 %v2738
    %v2745 = vshll.u32 %v2744, 16
    %v2746 = vadd.s32 %v2745, %v2743
    %v2747 = vand.u32 %v1942, 65535
    %v2748 = vshra.s32 %v1942, 16
    %v2749 = vcvt.s32.f32 %v2747
    %v2750 = vcvt.s32.f32 %v2748
    %2751 = vmin.xlane.f32.xlu0 %v2750
    %v2752 = vpop.xlane.xlu0 %2751
    %vm2753 = vcmp.eq.f32.partialorder %v2750, %v2752
    %v2754 = vsel %vm2753, %v2749, inf
    %2755 = vmin.xlane.f32.xlu0 %v2754
    %v2756 = vpop.xlane.xlu0 %2755
    %v2757 = vcvt.f32.s32 %v2756
    %v2758 = vcvt.f32.s32 %v2752
    %v2759 = vshll.u32 %v2758, 16
    %v2760 = vadd.s32 %v2759, %v2757
    %v2761 = vand.u32 %v1943, 65535
    %v2762 = vshra.s32 %v1943, 16
    %v2763 = vcvt.s32.f32 %v2761
    %v2764 = vcvt.s32.f32 %v2762
    %2765 = vmin.xlane.f32.xlu0 %v2764
    %v2766 = vpop.xlane.xlu0 %2765
    %vm2767 = vcmp.eq.f32.partialorder %v2764, %v2766
    %v2768 = vsel %vm2767, %v2763, inf
    %2769 = vmin.xlane.f32.xlu0 %v2768
    %v2770 = vpop.xlane.xlu0 %2769
    %v2771 = vcvt.f32.s32 %v2770
    %v2772 = vcvt.f32.s32 %v2766
    %v2773 = vshll.u32 %v2772, 16
    %v2774 = vadd.s32 %v2773, %v2771
    %v2775 = vand.u32 %v1944, 65535
    %v2776 = vshra.s32 %v1944, 16
    %v2777 = vcvt.s32.f32 %v2775
    %v2778 = vcvt.s32.f32 %v2776
    %2779 = vmin.xlane.f32.xlu0 %v2778
    %v2780 = vpop.xlane.xlu0 %2779
    %vm2781 = vcmp.eq.f32.partialorder %v2778, %v2780
    %v2782 = vsel %vm2781, %v2777, inf
    %2783 = vmin.xlane.f32.xlu0 %v2782
    %v2784 = vpop.xlane.xlu0 %2783
    %v2785 = vcvt.f32.s32 %v2784
    %v2786 = vcvt.f32.s32 %v2780
    %v2787 = vshll.u32 %v2786, 16
    %v2788 = vadd.s32 %v2787, %v2785
    %v2789 = vand.u32 %v1945, 65535
    %v2790 = vshra.s32 %v1945, 16
    %v2791 = vcvt.s32.f32 %v2789
    %v2792 = vcvt.s32.f32 %v2790
    %2793 = vmin.xlane.f32.xlu0 %v2792
    %v2794 = vpop.xlane.xlu0 %2793
    %vm2795 = vcmp.eq.f32.partialorder %v2792, %v2794
    %v2796 = vsel %vm2795, %v2791, inf
    %2797 = vmin.xlane.f32.xlu0 %v2796
    %v2798 = vpop.xlane.xlu0 %2797
    %v2799 = vcvt.f32.s32 %v2798
    %v2800 = vcvt.f32.s32 %v2794
    %v2801 = vshll.u32 %v2800, 16
    %v2802 = vadd.s32 %v2801, %v2799
    %v2803 = vand.u32 %v1946, 65535
    %v2804 = vshra.s32 %v1946, 16
    %v2805 = vcvt.s32.f32 %v2803
    %v2806 = vcvt.s32.f32 %v2804
    %2807 = vmin.xlane.f32.xlu0 %v2806
    %v2808 = vpop.xlane.xlu0 %2807
    %vm2809 = vcmp.eq.f32.partialorder %v2806, %v2808
    %v2810 = vsel %vm2809, %v2805, inf
    %2811 = vmin.xlane.f32.xlu0 %v2810
    %v2812 = vpop.xlane.xlu0 %2811
    %v2813 = vcvt.f32.s32 %v2812
    %v2814 = vcvt.f32.s32 %v2808
    %v2815 = vshll.u32 %v2814, 16
    %v2816 = vadd.s32 %v2815, %v2813
    %v2817 = vand.u32 %v1947, 65535
    %v2818 = vshra.s32 %v1947, 16
    %v2819 = vcvt.s32.f32 %v2817
    %v2820 = vcvt.s32.f32 %v2818
    %2821 = vmin.xlane.f32.xlu0 %v2820
    %v2822 = vpop.xlane.xlu0 %2821
    %vm2823 = vcmp.eq.f32.partialorder %v2820, %v2822
    %v2824 = vsel %vm2823, %v2819, inf
    %2825 = vmin.xlane.f32.xlu0 %v2824
    %v2826 = vpop.xlane.xlu0 %2825
    %v2827 = vcvt.f32.s32 %v2826
    %v2828 = vcvt.f32.s32 %v2822
    %v2829 = vshll.u32 %v2828, 16
    %v2830 = vadd.s32 %v2829, %v2827
    %v2831 = vand.u32 %v1948, 65535
    %v2832 = vshra.s32 %v1948, 16
    %v2833 = vcvt.s32.f32 %v2831
    %v2834 = vcvt.s32.f32 %v2832
    %2835 = vmin.xlane.f32.xlu0 %v2834
    %v2836 = vpop.xlane.xlu0 %2835
    %vm2837 = vcmp.eq.f32.partialorder %v2834, %v2836
    %v2838 = vsel %vm2837, %v2833, inf
    %2839 = vmin.xlane.f32.xlu0 %v2838
    %v2840 = vpop.xlane.xlu0 %2839
    %v2841 = vcvt.f32.s32 %v2840
    %v2842 = vcvt.f32.s32 %v2836
    %v2843 = vshll.u32 %v2842, 16
    %v2844 = vadd.s32 %v2843, %v2841
    %vm2845 = vcmask 7168
    %v2846 = vsel %vm2845, %v682, %v1962
    %v2847 = vsel %vm2845, %v696, %v1976
    %v2848 = vsel %vm2845, %v710, %v1990
    %v2849 = vsel %vm2845, %v724, %v2004
    %v2850 = vsel %vm2845, %v738, %v2018
    %v2851 = vsel %vm2845, %v752, %v2032
    %v2852 = vsel %vm2845, %v766, %v2046
    %v2853 = vsel %vm2845, %v780, %v2060
    %v2854 = vsel %vm2845, %v794, %v2074
    %v2855 = vsel %vm2845, %v808, %v2088
    %v2856 = vsel %vm2845, %v822, %v2102
    %v2857 = vsel %vm2845, %v836, %v2116
    %v2858 = vsel %vm2845, %v850, %v2130
    %v2859 = vsel %vm2845, %v864, %v2144
    %v2860 = vsel %vm2845, %v878, %v2158
    %v2861 = vsel %vm2845, %v892, %v2172
    %v2862 = vsel %vm2845, %v906, %v2186
    %v2863 = vsel %vm2845, %v920, %v2200
    %v2864 = vsel %vm2845, %v934, %v2214
    %v2865 = vsel %vm2845, %v948, %v2228
    %v2866 = vsel %vm2845, %v962, %v2242
    %v2867 = vsel %vm2845, %v976, %v2256
    %v2868 = vsel %vm2845, %v990, %v2270
    %v2869 = vsel %vm2845, %v1004, %v2284
    %v2870 = vsel %vm2845, %v1018, %v2298
    %v2871 = vsel %vm2845, %v1032, %v2312
    %v2872 = vsel %vm2845, %v1046, %v2326
    %v2873 = vsel %vm2845, %v1060, %v2340
    %v2874 = vsel %vm2845, %v1074, %v2354
    %v2875 = vsel %vm2845, %v1088, %v2368
    %v2876 = vsel %vm2845, %v1102, %v2382
    %v2877 = vsel %vm2845, %v1116, %v2396
    %v2878 = vsel %vm2845, %v1130, %v2410
    %v2879 = vsel %vm2845, %v1144, %v2424
    %v2880 = vsel %vm2845, %v1158, %v2438
    %v2881 = vsel %vm2845, %v1172, %v2452
    %v2882 = vsel %vm2845, %v1186, %v2466
    %v2883 = vsel %vm2845, %v1200, %v2480
    %v2884 = vsel %vm2845, %v1214, %v2494
    %v2885 = vsel %vm2845, %v1228, %v2508
    %v2886 = vsel %vm2845, %v1242, %v2522
    %v2887 = vsel %vm2845, %v1256, %v2536
    %v2888 = vsel %vm2845, %v1270, %v2550
    %v2889 = vsel %vm2845, %v1284, %v2564
    %v2890 = vsel %vm2845, %v1298, %v2578
    %v2891 = vsel %vm2845, %v1312, %v2592
    %v2892 = vsel %vm2845, %v1326, %v2606
    %v2893 = vsel %vm2845, %v1340, %v2620
    %v2894 = vsel %vm2845, %v1354, %v2634
    %v2895 = vsel %vm2845, %v1368, %v2648
    %v2896 = vsel %vm2845, %v1382, %v2662
    %v2897 = vsel %vm2845, %v1396, %v2676
    %v2898 = vsel %vm2845, %v1410, %v2690
    %v2899 = vsel %vm2845, %v1424, %v2704
    %v2900 = vsel %vm2845, %v1438, %v2718
    %v2901 = vsel %vm2845, %v1452, %v2732
    %v2902 = vsel %vm2845, %v1466, %v2746
    %v2903 = vsel %vm2845, %v1480, %v2760
    %v2904 = vsel %vm2845, %v1494, %v2774
    %v2905 = vsel %vm2845, %v1508, %v2788
    %v2906 = vsel %vm2845, %v1522, %v2802
    %v2907 = vsel %vm2845, %v1536, %v2816
    %v2908 = vsel %vm2845, %v1550, %v2830
    %v2909 = vsel %vm2845, %v1564, %v2844
    %vm2910 = vcmask 15360
    %2911 = vst.msk [vmem:[%s2] sm:$0xff] %vm2910, %v2846
    %2912 = vst.msk [vmem:[%s2 + $0x8] sm:$0xff] %vm2910, %v2847
    %2913 = vst.msk [vmem:[%s2 + $0x10] sm:$0xff] %vm2910, %v2848
    %2914 = vst.msk [vmem:[%s2 + $0x18] sm:$0xff] %vm2910, %v2849
    %2915 = vst.msk [vmem:[%s2 + $0x20] sm:$0xff] %vm2910, %v2850
    %2916 = vst.msk [vmem:[%s2 + $0x28] sm:$0xff] %vm2910, %v2851
    %2917 = vst.msk [vmem:[%s2 + $0x30] sm:$0xff] %vm2910, %v2852
    %2918 = vst.msk [vmem:[%s2 + $0x38] sm:$0xff] %vm2910, %v2853
    %2919 = vst.msk [vmem:[%s2 + $0x40] sm:$0xff] %vm2910, %v2854
    %2920 = vst.msk [vmem:[%s2 + $0x48] sm:$0xff] %vm2910, %v2855
    %2921 = vst.msk [vmem:[%s2 + $0x50] sm:$0xff] %vm2910, %v2856
    %2922 = vst.msk [vmem:[%s2 + $0x58] sm:$0xff] %vm2910, %v2857
    %2923 = vst.msk [vmem:[%s2 + $0x60] sm:$0xff] %vm2910, %v2858
    %2924 = vst.msk [vmem:[%s2 + $0x68] sm:$0xff] %vm2910, %v2859
    %2925 = vst.msk [vmem:[%s2 + $0x70] sm:$0xff] %vm2910, %v2860
    %2926 = vst.msk [vmem:[%s2 + $0x78] sm:$0xff] %vm2910, %v2861
    %2927 = vst.msk [vmem:[%s2 + $0x80] sm:$0xff] %vm2910, %v2862
    %2928 = vst.msk [vmem:[%s2 + $0x88] sm:$0xff] %vm2910, %v2863
    %2929 = vst.msk [vmem:[%s2 + $0x90] sm:$0xff] %vm2910, %v2864
    %2930 = vst.msk [vmem:[%s2 + $0x98] sm:$0xff] %vm2910, %v2865
    %2931 = vst.msk [vmem:[%s2 + $0xa0] sm:$0xff] %vm2910, %v2866
    %2932 = vst.msk [vmem:[%s2 + $0xa8] sm:$0xff] %vm2910, %v2867
    %2933 = vst.msk [vmem:[%s2 + $0xb0] sm:$0xff] %vm2910, %v2868
    %2934 = vst.msk [vmem:[%s2 + $0xb8] sm:$0xff] %vm2910, %v2869
    %2935 = vst.msk [vmem:[%s2 + $0xc0] sm:$0xff] %vm2910, %v2870
    %2936 = vst.msk [vmem:[%s2 + $0xc8] sm:$0xff] %vm2910, %v2871
    %2937 = vst.msk [vmem:[%s2 + $0xd0] sm:$0xff] %vm2910, %v2872
    %2938 = vst.msk [vmem:[%s2 + $0xd8] sm:$0xff] %vm2910, %v2873
    %2939 = vst.msk [vmem:[%s2 + $0xe0] sm:$0xff] %vm2910, %v2874
    %2940 = vst.msk [vmem:[%s2 + $0xe8] sm:$0xff] %vm2910, %v2875
    %2941 = vst.msk [vmem:[%s2 + $0xf0] sm:$0xff] %vm2910, %v2876
    %2942 = vst.msk [vmem:[%s2 + $0xf8] sm:$0xff] %vm2910, %v2877
    %2943 = vst.msk [vmem:[%s2 + $0x100] sm:$0xff] %vm2910, %v2878
    %2944 = vst.msk [vmem:[%s2 + $0x108] sm:$0xff] %vm2910, %v2879
    %2945 = vst.msk [vmem:[%s2 + $0x110] sm:$0xff] %vm2910, %v2880
    %2946 = vst.msk [vmem:[%s2 + $0x118] sm:$0xff] %vm2910, %v2881
    %2947 = vst.msk [vmem:[%s2 + $0x120] sm:$0xff] %vm2910, %v2882
    %2948 = vst.msk [vmem:[%s2 + $0x128] sm:$0xff] %vm2910, %v2883
    %2949 = vst.msk [vmem:[%s2 + $0x130] sm:$0xff] %vm2910, %v2884
    %2950 = vst.msk [vmem:[%s2 + $0x138] sm:$0xff] %vm2910, %v2885
    %2951 = vst.msk [vmem:[%s2 + $0x140] sm:$0xff] %vm2910, %v2886
    %2952 = vst.msk [vmem:[%s2 + $0x148] sm:$0xff] %vm2910, %v2887
    %2953 = vst.msk [vmem:[%s2 + $0x150] sm:$0xff] %vm2910, %v2888
    %2954 = vst.msk [vmem:[%s2 + $0x158] sm:$0xff] %vm2910, %v2889
    %2955 = vst.msk [vmem:[%s2 + $0x160] sm:$0xff] %vm2910, %v2890
    %2956 = vst.msk [vmem:[%s2 + $0x168] sm:$0xff] %vm2910, %v2891
    %2957 = vst.msk [vmem:[%s2 + $0x170] sm:$0xff] %vm2910, %v2892
    %2958 = vst.msk [vmem:[%s2 + $0x178] sm:$0xff] %vm2910, %v2893
    %2959 = vst.msk [vmem:[%s2 + $0x180] sm:$0xff] %vm2910, %v2894
    %2960 = vst.msk [vmem:[%s2 + $0x188] sm:$0xff] %vm2910, %v2895
    %2961 = vst.msk [vmem:[%s2 + $0x190] sm:$0xff] %vm2910, %v2896
    %2962 = vst.msk [vmem:[%s2 + $0x198] sm:$0xff] %vm2910, %v2897
    %2963 = vst.msk [vmem:[%s2 + $0x1a0] sm:$0xff] %vm2910, %v2898
    %2964 = vst.msk [vmem:[%s2 + $0x1a8] sm:$0xff] %vm2910, %v2899
    %2965 = vst.msk [vmem:[%s2 + $0x1b0] sm:$0xff] %vm2910, %v2900
    %2966 = vst.msk [vmem:[%s2 + $0x1b8] sm:$0xff] %vm2910, %v2901
    %2967 = vst.msk [vmem:[%s2 + $0x1c0] sm:$0xff] %vm2910, %v2902
    %2968 = vst.msk [vmem:[%s2 + $0x1c8] sm:$0xff] %vm2910, %v2903
    %2969 = vst.msk [vmem:[%s2 + $0x1d0] sm:$0xff] %vm2910, %v2904
    %2970 = vst.msk [vmem:[%s2 + $0x1d8] sm:$0xff] %vm2910, %v2905
    %2971 = vst.msk [vmem:[%s2 + $0x1e0] sm:$0xff] %vm2910, %v2906
    %2972 = vst.msk [vmem:[%s2 + $0x1e8] sm:$0xff] %vm2910, %v2907
    %2973 = vst.msk [vmem:[%s2 + $0x1f0] sm:$0xff] %vm2910, %v2908
    %2974 = vst.msk [vmem:[%s2 + $0x1f8] sm:$0xff] %vm2910, %v2909
    // Predicated region
    $region18: #{tpu_custom_call.1} parent=1 // pred_check
      _
    $region19: #{tpu_custom_call.1} parent=1 // pred_check_branch
      %2976 = sbr.rel (0) target = $region21
    $region20: #{tpu_custom_call.1} parent=1 // pred_region
      _
    $region21: #{tpu_custom_call.1} parent=1 // pred_fallthru
      _
    // Predicated region
    $region22: #{tpu_custom_call.1} parent=1 // pred_check
      _
    $region23: #{tpu_custom_call.1} parent=1 // pred_check_branch
      %2978 = sbr.rel (0) target = $region25
    $region24: #{tpu_custom_call.1} parent=1 // pred_region
      _
    $region25: #{tpu_custom_call.1} parent=1 // pred_fallthru
      _
    %2979 = vsyncpa [#allocation3], 1
    %2980 = vsyncpa [#allocation5], 1

</llo_original>
